<compile_context>
chip_gen: v7x
topology: tpu7x:2x2x1
jax: 0.10.0
libtpu: 0.0.40
codegen_flags: <defaults>
</compile_context>

<pallas_src>
import functools

import jax
import jax.numpy as jnp
from jax import lax
from jax.experimental import pallas as pl
from jax.experimental.pallas import tpu as pltpu


# Valid on all generations: v5e/v6e have 128 MiB VMEM, v7x only 64 MiB.
# Actual per-call need after M-tiling is < ~12 MiB.
_VMEM_LIMIT_BYTES = 32 * 1024 * 1024
_TILE_M_TARGET = 512


# ----------------------------- Pallas kernels ------------------------------

def _conv_kernel(*refs, apply_relu, has_residual, want_stats):
    # refs = (x, w, bias[, res], out[, stats])
    x_ref, w_ref, b_ref = refs[0], refs[1], refs[2]
    i = 3
    res_ref = None
    if has_residual:
        res_ref = refs[i]
        i += 1
    o_ref = refs[i]
    i += 1
    stats_ref = refs[i] if want_stats else None

    # bf16 inputs on the MXU, f32 accumulator; epilogue stays f32
    # (v5e has no bf16 VPU).
    y = jnp.dot(x_ref[...], w_ref[...], preferred_element_type=jnp.float32)
    y = y + b_ref[...]                       # BN scale already folded into w
    if has_residual:
        y = y + res_ref[...].astype(jnp.float32)
    if apply_relu:
        y = jnp.maximum(y, 0.0)
    o_ref[...] = y.astype(o_ref.dtype)

    if want_stats:
        # Per-tile partial sums, written lane-dense into an (8, 128) block:
        # row 0 carries sum(|y|), row 1 carries count(y > 0).
        s_abs = jnp.sum(jnp.abs(y), keepdims=True)                      # (1,1)
        s_pos = jnp.sum((y > 0.0).astype(jnp.float32), keepdims=True)   # (1,1)
        row = lax.broadcasted_iota(jnp.int32, (8, 128), 0)
        stats = jnp.where(row == 0, s_abs, jnp.zeros((8, 128), jnp.float32))
        stats = jnp.where(row == 1, s_pos, stats)
        stats_ref[...] = stats


def _head_kernel(x_ref, w_ref, b_ref, emb_ref, logit_ref):
    # x: [N, H*W, C] -> global average pool over spatial, then linear layer.
    x = x_ref[...].astype(jnp.float32)
    emb = jnp.mean(x, axis=1)                                  # [N, C]
    emb_ref[...] = emb
    logit_ref[...] = (jnp.dot(emb, w_ref[...],
                              preferred_element_type=jnp.float32)
                      + b_ref[...])


# ----------------------------- kernel wrappers ------------------------------

def _pick_tile_m(m, target=_TILE_M_TARGET):
    """Largest tile <= target that divides m (multiple of 8), else m."""
    if m <= target:
        return m
    for t in range(target, 7, -1):
        if m % t == 0 and t % 8 == 0:
            return t
    return m


def fused_conv(patches, w2d, bias, residual, apply_relu, want_stats):
    """patches:[M,K] bf16, w2d:[K,Cout] bf16 (BN scale folded), bias:[1,Cout] f32,
    residual:[M,Cout] or None.  Returns (out_bf16[M,Cout], (l1, act) or None)."""
    M, K = patches.shape
    cout = w2d.shape[1]
    tm = _pick_tile_m(M)
    n_tiles = M // tm

    kernel = functools.partial(_conv_kernel, apply_relu=apply_relu,
                               has_residual=residual is not None,
                               want_stats=want_stats)

    in_specs = [
        pl.BlockSpec((tm, K), lambda i: (i, 0)),       # patch tile (pipelined)
        pl.BlockSpec((K, cout), lambda i: (0, 0)),     # weights (resident)
        pl.BlockSpec((1, cout), lambda i: (0, 0)),     # folded BN bias
    ]
    args = [patches, w2d, bias]
    if residual is not None:
        in_specs.append(pl.BlockSpec((tm, cout), lambda i: (i, 0)))
        args.append(residual)

    if want_stats:
        out_shape = (jax.ShapeDtypeStruct((M, cout), jnp.bfloat16),
                     jax.ShapeDtypeStruct((n_tiles * 8, 128), jnp.float32))
        out_specs = (pl.BlockSpec((tm, cout), lambda i: (i, 0)),
                     pl.BlockSpec((8, 128), lambda i: (i, 0)))
    else:
        out_shape = jax.ShapeDtypeStruct((M, cout), jnp.bfloat16)
        out_specs = pl.BlockSpec((tm, cout), lambda i: (i, 0))

    result = pl.pallas_call(
        kernel,
        out_shape=out_shape,
        grid=(n_tiles,),
        in_specs=in_specs,
        out_specs=out_specs,
        compiler_params=pltpu.CompilerParams(
            dimension_semantics=("parallel",),
            vmem_limit_bytes=_VMEM_LIMIT_BYTES),
    )(*args)

    if not want_stats:
        return result, None

    out, partial = result
    denom = float(M * cout)
    l1 = partial[0::8, 0].sum() / denom    # mean(|y|)
    act = partial[1::8, 0].sum() / denom   # mean(y > 0)
    return out, (l1, act)


def head(x_nhwc, w, b):
    N, H, W, C = x_nhwc.shape
    # F.avg_pool2d(out, 4) on the 4x4 layer-4 feature map followed by flatten
    # is a global spatial mean (input spatial = 32 -> layer4 spatial = 4).
    x3 = x_nhwc.reshape(N, H * W, C)
    num_classes = w.shape[1]
    emb, logits = pl.pallas_call(
        _head_kernel,
        out_shape=(jax.ShapeDtypeStruct((N, C), jnp.float32),
                   jax.ShapeDtypeStruct((N, num_classes), jnp.float32)),
        grid=(1,),
        in_specs=[pl.BlockSpec((N, H * W, C), lambda i: (0, 0, 0)),
                  pl.BlockSpec((C, num_classes), lambda i: (0, 0)),
                  pl.BlockSpec((1, num_classes), lambda i: (0, 0))],
        out_specs=(pl.BlockSpec((N, C), lambda i: (0, 0)),
                   pl.BlockSpec((N, num_classes), lambda i: (0, 0))),
        compiler_params=pltpu.CompilerParams(
            vmem_limit_bytes=_VMEM_LIMIT_BYTES),
    )(x3, w, b)
    return emb, logits


# ------------------------------ JAX glue ------------------------------------

def im2col(x, ksize, stride, padding):
    # x: [N, H, W, C] NHWC (bf16) -> patches [N*Ho*Wo, ksize*ksize*C] (bf16)
    N, H, W, C = x.shape
    xp = jnp.pad(x, ((0, 0), (padding, padding), (padding, padding), (0, 0)))
    Ho = (H + 2 * padding - ksize) // stride + 1
    Wo = (W + 2 * padding - ksize) // stride + 1
    cols = []
    for kh in range(ksize):
        for kw in range(ksize):
            cols.append(
                xp[:, kh:kh + Ho * stride:stride, kw:kw + Wo * stride:stride, :])
    patches = jnp.concatenate(cols, axis=-1)
    return patches.reshape(N * Ho * Wo, ksize * ksize * C), (N, Ho, Wo)


def conv_bn_act(x, w, scale, bias, *, stride, ksize, relu, residual=None,
                want_stats=True):
    patches, (N, Ho, Wo) = im2col(x, ksize, stride, padding=ksize // 2)
    cout = w.shape[-1]
    # Fold the BN scale into the weight columns; cast operands to bf16 for the
    # MXU / to halve HBM->VMEM traffic.  Bias stays f32 for the f32 epilogue.
    w2d = (w.reshape(-1, cout) * scale).astype(jnp.bfloat16)
    res2d = None if residual is None else residual.reshape(N * Ho * Wo, cout)
    out, stats = fused_conv(patches, w2d, bias, res2d, relu, want_stats)
    out = out.reshape(N, Ho, Wo, cout)
    if want_stats:
        return out, stats[0], stats[1]
    return out


def res_block(x, p):
    # conv1 -> bn1 -> relu (stats on relu output)
    out1, l1_a, act_a = conv_bn_act(x, p['w1'], p['s1'], p['b1'],
                                    stride=p['stride'], ksize=3, relu=True)
    # dropout(p=0.0) == identity
    if p['has_shortcut']:
        sc = conv_bn_act(x, p['wsc'], p['ssc'], p['bsc'],
                         stride=p['stride'], ksize=1, relu=False,
                         want_stats=False)
    else:
        sc = x
    # conv2 -> bn2 -> (+shortcut) -> relu (stats on final output)
    out2, l1_b, act_b = conv_bn_act(out1, p['w2'], p['s2'], p['b2'],
                                    stride=1, ksize=3, relu=True, residual=sc)
    return out1, out2, (l1_a, act_a), (l1_b, act_b)


# ---------------------------- parameter init --------------------------------

def init_conv(key, kh, kw, cin, cout):
    fan_in = kh * kw * cin
    return (jax.random.normal(key, (kh, kw, cin, cout), jnp.float32)
            * (1.0 / jnp.sqrt(fan_in)))


def init_bn(key, c):
    k1, k2, k3, k4 = jax.random.split(key, 4)
    gamma = 1.0 + 0.1 * jax.random.normal(k1, (c,), jnp.float32)
    beta = 0.1 * jax.random.normal(k2, (c,), jnp.float32)
    mean = 0.1 * jax.random.normal(k3, (c,), jnp.float32)
    var = 1.0 + 0.1 * jax.random.uniform(k4, (c,), jnp.float32)
    eps = 1e-5
    scale = gamma / jnp.sqrt(var + eps)
    bias = beta - mean * scale
    return scale.reshape(1, c), bias.reshape(1, c)


def init_block(key, cin, cout, stride):
    ks = jax.random.split(key, 6)
    p = {'stride': stride, 'has_shortcut': (stride != 1 or cin != cout)}
    p['w1'] = init_conv(ks[0], 3, 3, cin, cout)
    p['s1'], p['b1'] = init_bn(ks[1], cout)
    p['w2'] = init_conv(ks[2], 3, 3, cout, cout)
    p['s2'], p['b2'] = init_bn(ks[3], cout)
    if p['has_shortcut']:
        p['wsc'] = init_conv(ks[4], 1, 1, cin, cout)
        p['ssc'], p['bsc'] = init_bn(ks[5], cout)
    return p


def init_params(key, num_classes=10):
    stages = [64, 64, 128, 256, 512]
    keys = jax.random.split(key, 12)
    params = {}
    params['w1'] = init_conv(keys[0], 3, 3, 3, stages[0])
    params['s1'], params['b1'] = init_bn(keys[1], stages[0])
    cfgs = [('layer1_0', stages[0], stages[1], 1),
            ('layer1_1', stages[1], stages[1], 1),
            ('layer2_0', stages[1], stages[2], 2),
            ('layer2_1', stages[2], stages[2], 1),
            ('layer3_0', stages[2], stages[3], 2),
            ('layer3_1', stages[3], stages[3], 1),
            ('layer4_0', stages[3], stages[4], 2),
            ('layer4_1', stages[4], stages[4], 1)]
    for i, (name, cin, cout, stride) in enumerate(cfgs):
        params[name] = init_block(keys[2 + i], cin, cout, stride)
    params['lin_w'] = (jax.random.normal(keys[10], (stages[4], num_classes),
                                         jnp.float32)
                       * (1.0 / jnp.sqrt(stages[4])))
    params['lin_b'] = 0.01 * jax.random.normal(keys[11], (1, num_classes),
                                               jnp.float32)
    return params


# ------------------------------ full forward --------------------------------

def resnet18_forward(params, x_nchw):
    net = {}
    net['images'] = x_nchw
    # NCHW -> NHWC, bf16 activations end-to-end.
    x = jnp.transpose(x_nchw, (0, 2, 3, 1)).astype(jnp.bfloat16)

    out, l1, act = conv_bn_act(x, params['w1'], params['s1'], params['b1'],
                               stride=1, ksize=3, relu=True)
    net['L1_act1'], net['num_act1'] = l1, act

    idx = 2
    for name in ['layer1_0', 'layer1_1', 'layer2_0', 'layer2_1',
                 'layer3_0', 'layer3_1', 'layer4_0', 'layer4_1']:
        _, out, (l1a, acta), (l1b, actb) = res_block(out, params[name])
        net[f'L1_act{idx}'], net[f'num_act{idx}'] = l1a, acta
        net[f'L1_act{idx + 1}'], net[f'num_act{idx + 1}'] = l1b, actb
        idx += 2

    emb, logits = head(out, params['lin_w'], params['lin_b'])
    net['embeddings'] = emb
    net['logits'] = logits
    return net


if __name__ == "__main__":
    key = jax.random.PRNGKey(0)
    kx, kp = jax.random.split(key)
    # Spatial size 32 so that the three stride-2 stages produce a 4x4 map and
    # F.avg_pool2d(out, 4) is well defined (as in the original CIFAR model).
    x = jax.random.normal(kx, (2, 3, 32, 32), jnp.float32)
    params = init_params(kp, num_classes=10)

    net = resnet18_forward(params, x)
    jax.block_until_ready(net)

    assert net['logits'].shape == (2, 10)
    assert net['embeddings'].shape == (2, 512)
    assert bool(jnp.isfinite(net['logits']).all())
    print("KERNEL_OK")
</pallas_src>

<mosaic_0001>
module attributes {stable_mosaic.version = 11 : i64} {
  func.func @_conv_kernel(%arg0: i32, %arg1: memref<512x27xbf16, #tpu.memory_space<vmem>>, %arg2: memref<27x64xbf16, #tpu.memory_space<vmem>>, %arg3: memref<1x64xf32, #tpu.memory_space<vmem>>, %arg4: memref<512x64xbf16, #tpu.memory_space<vmem>>, %arg5: memref<8x128xf32, #tpu.memory_space<vmem>>) attributes {dimension_semantics = [#tpu.dimension_semantics<parallel>], iteration_bounds = array<i64: 4>, scalar_prefetch = 0 : i64, scratch_operands = 0 : i64, tpu.core_type = #tpu.core_type<tc>, window_params = [{transform_indices = @transform_0, window_bounds = array<i64: 512, 27>}, {pipeline_mode = #tpu.pipeline_mode<synchronous>, transform_indices = @transform_1, window_bounds = array<i64: 27, 64>}, {pipeline_mode = #tpu.pipeline_mode<synchronous>, transform_indices = @transform_2, window_bounds = array<i64: 1, 64>}, {transform_indices = @transform_3, window_bounds = array<i64: 512, 64>}, {transform_indices = @transform_4, window_bounds = array<i64: 8, 128>}]} {
    %c0 = arith.constant 0 : index
    %c0_0 = arith.constant 0 : index
    %0 = vector.load %arg1[%c0, %c0_0] : memref<512x27xbf16, #tpu.memory_space<vmem>>, vector<512x27xbf16>
    %c0_1 = arith.constant 0 : index
    %c0_2 = arith.constant 0 : index
    %1 = vector.load %arg2[%c0_1, %c0_2] : memref<27x64xbf16, #tpu.memory_space<vmem>>, vector<27x64xbf16>
    %cst = arith.constant dense<0.000000e+00> : vector<512x64xf32>
    %2 = tpu.matmul %0, %1, %cst {dimension_numbers = #tpu.dot_dimension_numbers<[1], [0], [0], [1], [0, 0, 1, 1], [], []>} : vector<512x27xbf16>, vector<27x64xbf16>, vector<512x64xf32> -> vector<512x64xf32>
    %c0_3 = arith.constant 0 : index
    %c0_4 = arith.constant 0 : index
    %3 = vector.load %arg3[%c0_3, %c0_4] : memref<1x64xf32, #tpu.memory_space<vmem>>, vector<1x64xf32>
    %4 = vector.broadcast %3 : vector<1x64xf32> to vector<512x64xf32>
    %5 = arith.addf %2, %4 : vector<512x64xf32>
    %cst_5 = arith.constant 0.000000e+00 : f32
    %6 = vector.broadcast %cst_5 : f32 to vector<512x64xf32>
    %7 = arith.maximumf %5, %6 : vector<512x64xf32>
    %8 = arith.truncf %7 : vector<512x64xf32> to vector<512x64xbf16>
    %c0_6 = arith.constant 0 : index
    %c0_7 = arith.constant 0 : index
    %9 = vector.load %arg4[%c0_6, %c0_7] : memref<512x64xbf16, #tpu.memory_space<vmem>>, vector<512x64xbf16>
    tpu.vector_store %arg4[%c0_6, %c0_7], %8 {strides = array<i32>} : memref<512x64xbf16, #tpu.memory_space<vmem>>, vector<512x64xbf16>,
    %10 = math.absf %7 : vector<512x64xf32>
    %11 = vector.shape_cast %10 : vector<512x64xf32> to vector<1x512x64xf32>
    %cst_8 = arith.constant dense<0.000000e+00> : vector<1xf32>
    %12 = vector.multi_reduction <add>, %11, %cst_8 [1, 2] : vector<1x512x64xf32> to vector<1xf32>
    %13 = vector.shape_cast %12 : vector<1xf32> to vector<1x1x1xf32>
    %14 = vector.extract %13[0, 0, 0] : f32 from vector<1x1x1xf32>
    %15 = vector.broadcast %14 : f32 to vector<1x1xf32>
    %cst_9 = arith.constant 0.000000e+00 : f32
    %16 = vector.broadcast %cst_9 : f32 to vector<512x64xf32>
    %17 = arith.cmpf ogt, %7, %16 : vector<512x64xf32>
    %18 = arith.extui %17 : vector<512x64xi1> to vector<512x64xi32>
    %19 = arith.sitofp %18 : vector<512x64xi32> to vector<512x64xf32>
    %20 = vector.shape_cast %19 : vector<512x64xf32> to vector<1x512x64xf32>
    %cst_10 = arith.constant dense<0.000000e+00> : vector<1xf32>
    %21 = vector.multi_reduction <add>, %20, %cst_10 [1, 2] : vector<1x512x64xf32> to vector<1xf32>
    %22 = vector.shape_cast %21 : vector<1xf32> to vector<1x1x1xf32>
    %23 = vector.extract %22[0, 0, 0] : f32 from vector<1x1x1xf32>
    %24 = vector.broadcast %23 : f32 to vector<1x1xf32>
    %25 = tpu.iota {dimensions = array<i32: 0>} : vector<8x128xi32>
    %c0_i32 = arith.constant 0 : i32
    %26 = vector.broadcast %c0_i32 : i32 to vector<8x128xi32>
    %27 = arith.cmpi eq, %25, %26 : vector<8x128xi32>
    %cst_11 = arith.constant 0.000000e+00 : f32
    %28 = vector.broadcast %cst_11 : f32 to vector<8x128xf32>
    %29 = vector.shape_cast %15 : vector<1x1xf32> to vector<1x1xf32>
    %30 = vector.broadcast %29 : vector<1x1xf32> to vector<8x128xf32>
    %31 = arith.select %27, %30, %28 : vector<8x128xi1>, vector<8x128xf32>
    %c1_i32 = arith.constant 1 : i32
    %32 = vector.broadcast %c1_i32 : i32 to vector<8x128xi32>
    %33 = arith.cmpi eq, %25, %32 : vector<8x128xi32>
    %34 = vector.shape_cast %24 : vector<1x1xf32> to vector<1x1xf32>
    %35 = vector.broadcast %34 : vector<1x1xf32> to vector<8x128xf32>
    %36 = arith.select %33, %35, %31 : vector<8x128xi1>, vector<8x128xf32>
    %c0_12 = arith.constant 0 : index
    %c0_13 = arith.constant 0 : index
    %37 = vector.load %arg5[%c0_12, %c0_13] : memref<8x128xf32, #tpu.memory_space<vmem>>, vector<8x128xf32>
    tpu.vector_store %arg5[%c0_12, %c0_13], %36 {strides = array<i32>} : memref<8x128xf32, #tpu.memory_space<vmem>>, vector<8x128xf32>,
    return
  }
  func.func @transform_0(%arg0: i32) -> (i32, i32) {
    %c0_i32 = arith.constant 0 : i32
    %c0_i32_0 = arith.constant 0 : i32
    return %arg0, %c0_i32 : i32, i32
  }
  func.func @transform_1(%arg0: i32) -> (i32, i32) {
    %c0_i32 = arith.constant 0 : i32
    %c0_i32_0 = arith.constant 0 : i32
    %c0_i32_1 = arith.constant 0 : i32
    return %c0_i32, %c0_i32_0 : i32, i32
  }
  func.func @transform_2(%arg0: i32) -> (i32, i32) {
    %c0_i32 = arith.constant 0 : i32
    %c0_i32_0 = arith.constant 0 : i32
    %c0_i32_1 = arith.constant 0 : i32
    return %c0_i32, %c0_i32_0 : i32, i32
  }
  func.func @transform_3(%arg0: i32) -> (i32, i32) {
    %c0_i32 = arith.constant 0 : i32
    %c0_i32_0 = arith.constant 0 : i32
    return %arg0, %c0_i32 : i32, i32
  }
  func.func @transform_4(%arg0: i32) -> (i32, i32) {
    %c0_i32 = arith.constant 0 : i32
    %c0_i32_0 = arith.constant 0 : i32
    return %arg0, %c0_i32 : i32, i32
  }
}

</mosaic_0001>

<llo_original>
// kernel: tpu_custom_call.1
$region0: #{tpu_custom_call.1}
  #allocation0 [shape = 'u32[]', space=smem, size = 0x4, offset = 0x4, fixed_abs, tag = 'smem constant byte address 0x4 - core index']
  #allocation1 [shape = 'u32[144,128]{1,0:T(1,128)}', space=vmem, size = 0x12000, scoped, tag = 'internal scratch']
  %s0 = inlined_call_operand.vmem [shape: bf16[2048,27], index: 0, kind: input, shape index: {}]
  %s1 = inlined_call_operand.vmem [shape: bf16[27,64], index: 1, kind: input, shape index: {}]
  %s2 = inlined_call_operand.vmem [shape: f32[1,64], index: 2, kind: input, shape index: {}]
  %s3 = inlined_call_operand.vmem [shape: bf16[2048,64], index: 3, kind: output, shape index: {0}]
  %s4 = inlined_call_operand.hbm [shape: f32[32,128], index: 4, kind: output, shape index: {1}]
  %5 = xla_tuple %s3, %s4
  %s6 = sld [smem:[#allocation0]]
  $region53: #{tpu_custom_call.1} parent=0
    _
  %s8 = ssub.s32 1, %s6
  %s9 = scalar_select 0, %s8, %s6
  $region1: #{tpu_custom_call.1} parent=0
    #allocation2 [shape = 'u8[8192]{0}', space=vmem, size = 0x2000, scoped, tag = 'output window, operand 1']
    #allocation3 [shape = 's32[2]{0}', space=sflag, size = 0x8, scoped, tag = 'scoped memory for tpu_custom_call.1']
    %10 = vsyncpa [#allocation3], 0
    %s11 = scalar_lea.sflag [#allocation3], 1
    %12 = vsyncpa %s11, 0
    loop: start=0, step=1, limit=6
    $region2: #{tpu_custom_call.1} parent=1 // loop_pre_header
      _
    $region3: #{tpu_custom_call.1} parent=1 // loop_header
      %s14 = sphi 0, %s18
      %p15 = scmp.ge.s32.totalorder %s14, 6
      %s24 = sphi 0, %s26
      %s27 = sphi 0, %s24
      %s28 = sphi 0, %s27
      %s44 = sphi 0, %s28
      %s48 = sphi 0, %s48
      %s50 = sphi 0, %s48
      %s51 = sphi 0, %s50
      %s65 = sphi 0, %s51
      %s69 = sphi 0, %s69
      %s71 = sphi 0, %s69
      %s72 = sphi 0, %s71
      %s86 = sphi 0, %s72
      %s92 = sphi 0, %s94
      %s95 = sphi 0, %s92
      %s96 = sphi 0, %s95
      %s112 = sphi 0, %s96
      %s118 = sphi 0, %s120
      %s121 = sphi 0, %s118
      %s122 = sphi 0, %s121
      %s138 = sphi 0, %s122
    $region4: #{tpu_custom_call.1} parent=1 // loop_header_branch
      %17 = sbr.rel (%p15) target = $region8
    $region5: #{tpu_custom_call.1} parent=1 // loop_body
      %s19 = ssub.s32 %s14, 1
      %s20 = ssub.s32 %s14, 2
      %s21 = sadd.s32 %s14, 1
      %s22 = ssub.s32 %s14, %s21
      %p23 = scmp.eq.s32.totalorder %s22, 0
      %s25 = sadd.s32 %s24, 1
      %s26 = scalar_select %p23, %s24, %s25
      %p29 = pneg %p23
      %p30 = scmp.eq.s32.totalorder %s14, 3
      %p31 = por %p29, %p30
      %p32 = scmp.ne.s32.totalorder %s24, %s27
      %p33 = scmp.eq.s32.totalorder %s14, 0
      %p34 = por %p32, %p33
      %p35 = scmp.ne.s32.totalorder %s24, %s27
      %p36 = scmp.eq.s32.totalorder %s19, 3
      %p37 = por %p35, %p36
      %p38 = scmp.ne.s32.totalorder %s27, %s28
      %p39 = scmp.eq.s32.totalorder %s19, 0
      %p40 = por %p38, %p39
      %p41 = scmp.ne.s32.totalorder %s27, %s28
      %p42 = scmp.eq.s32.totalorder %s20, 3
      %p43 = por %p41, %p42
      %p45 = scmp.ne.s32.totalorder %s28, %s44
      %p46 = scmp.eq.s32.totalorder %s20, 0
      %p47 = por %p45, %p46
      %s49 = sadd.s32 %s48, 1
      %p52 = scmp.eq.s32.totalorder %s14, 3
      %p53 = scmp.ne.s32.totalorder %s48, %s50
      %p54 = scmp.eq.s32.totalorder %s14, 0
      %p55 = por %p53, %p54
      %p56 = scmp.ne.s32.totalorder %s48, %s50
      %p57 = scmp.eq.s32.totalorder %s19, 3
      %p58 = por %p56, %p57
      %p59 = scmp.ne.s32.totalorder %s50, %s51
      %p60 = scmp.eq.s32.totalorder %s19, 0
      %p61 = por %p59, %p60
      %p62 = scmp.ne.s32.totalorder %s50, %s51
      %p63 = scmp.eq.s32.totalorder %s20, 3
      %p64 = por %p62, %p63
      %p66 = scmp.ne.s32.totalorder %s51, %s65
      %p67 = scmp.eq.s32.totalorder %s20, 0
      %p68 = por %p66, %p67
      %s70 = sadd.s32 %s69, 1
      %p73 = scmp.eq.s32.totalorder %s14, 3
      %p74 = scmp.ne.s32.totalorder %s69, %s71
      %p75 = scmp.eq.s32.totalorder %s14, 0
      %p76 = por %p74, %p75
      %p77 = scmp.ne.s32.totalorder %s69, %s71
      %p78 = scmp.eq.s32.totalorder %s19, 3
      %p79 = por %p77, %p78
      %p80 = scmp.ne.s32.totalorder %s71, %s72
      %p81 = scmp.eq.s32.totalorder %s19, 0
      %p82 = por %p80, %p81
      %p83 = scmp.ne.s32.totalorder %s71, %s72
      %p84 = scmp.eq.s32.totalorder %s20, 3
      %p85 = por %p83, %p84
      %p87 = scmp.ne.s32.totalorder %s72, %s86
      %p88 = scmp.eq.s32.totalorder %s20, 0
      %p89 = por %p87, %p88
      %s90 = ssub.s32 %s14, %s21
      %p91 = scmp.eq.s32.totalorder %s90, 0
      %s93 = sadd.s32 %s92, 1
      %s94 = scalar_select %p91, %s92, %s93
      %p97 = pneg %p91
      %p98 = scmp.eq.s32.totalorder %s14, 3
      %p99 = por %p97, %p98
      %p100 = scmp.ne.s32.totalorder %s92, %s95
      %p101 = scmp.eq.s32.totalorder %s14, 0
      %p102 = por %p100, %p101
      %p103 = scmp.ne.s32.totalorder %s92, %s95
      %p104 = scmp.eq.s32.totalorder %s19, 3
      %p105 = por %p103, %p104
      %p106 = scmp.ne.s32.totalorder %s95, %s96
      %p107 = scmp.eq.s32.totalorder %s19, 0
      %p108 = por %p106, %p107
      %p109 = scmp.ne.s32.totalorder %s95, %s96
      %p110 = scmp.eq.s32.totalorder %s20, 3
      %p111 = por %p109, %p110
      %p113 = scmp.ne.s32.totalorder %s96, %s112
      %p114 = scmp.eq.s32.totalorder %s20, 0
      %p115 = por %p113, %p114
      %s116 = ssub.s32 %s14, %s21
      %p117 = scmp.eq.s32.totalorder %s116, 0
      %s119 = sadd.s32 %s118, 1
      %s120 = scalar_select %p117, %s118, %s119
      %p123 = pneg %p117
      %p124 = scmp.eq.s32.totalorder %s14, 3
      %p125 = por %p123, %p124
      %p126 = scmp.ne.s32.totalorder %s118, %s121
      %p127 = scmp.eq.s32.totalorder %s14, 0
      %p128 = por %p126, %p127
      %p129 = scmp.ne.s32.totalorder %s118, %s121
      %p130 = scmp.eq.s32.totalorder %s19, 3
      %p131 = por %p129, %p130
      %p132 = scmp.ne.s32.totalorder %s121, %s122
      %p133 = scmp.eq.s32.totalorder %s19, 0
      %p134 = por %p132, %p133
      %p135 = scmp.ne.s32.totalorder %s121, %s122
      %p136 = scmp.eq.s32.totalorder %s20, 3
      %p137 = por %p135, %p136
      %p139 = scmp.ne.s32.totalorder %s122, %s138
      %p140 = scmp.eq.s32.totalorder %s20, 0
      %p141 = por %p139, %p140
      %p142 = scmp.le.s32.totalorder 1, %s14
      %p143 = scmp.lt.s32.totalorder %s14, 5
      %p144 = pnand %p142, %p143
      %p145 = pneg %p144
      // Predicated region
      $region9: #{tpu_custom_call.1} parent=5 // pred_check
        _
      $region10: #{tpu_custom_call.1} parent=5 // pred_check_branch
        %147 = sbr.rel (%p144) target = $region12
      $region11: #{tpu_custom_call.1} parent=5 // pred_region
        %s148 = ssub.s32 %s14, 1
        // Predicated region
        $region13: #{tpu_custom_call.1} parent=11 // pred_check
          %p149 = pneg %p61
        $region14: #{tpu_custom_call.1} parent=11 // pred_check_branch
          %151 = sbr.rel (%p149) target = $region16
        $region15: #{tpu_custom_call.1} parent=11 // pred_region
          _
        $region16: #{tpu_custom_call.1} parent=11 // pred_fallthru
          _
        // Predicated region
        $region17: #{tpu_custom_call.1} parent=11 // pred_check
          %p152 = pneg %p82
        $region18: #{tpu_custom_call.1} parent=11 // pred_check_branch
          %154 = sbr.rel (%p152) target = $region20
        $region19: #{tpu_custom_call.1} parent=11 // pred_region
          _
        $region20: #{tpu_custom_call.1} parent=11 // pred_fallthru
          _
      $region12: #{tpu_custom_call.1} parent=5 // pred_fallthru
        _
      %p155 = scmp.lt.s32.totalorder %s14, 4
      // Predicated region
      $region21: #{tpu_custom_call.1} parent=5 // pred_check
        %p156 = pneg %p155
      $region22: #{tpu_custom_call.1} parent=5 // pred_check_branch
        %158 = sbr.rel (%p156) target = $region24
      $region23: #{tpu_custom_call.1} parent=5 // pred_region
        // Predicated region
        $region25: #{tpu_custom_call.1} parent=23 // pred_check
          %p159 = pneg %p34
        $region26: #{tpu_custom_call.1} parent=23 // pred_check_branch
          %161 = sbr.rel (%p159) target = $region28
        $region27: #{tpu_custom_call.1} parent=23 // pred_region
          %s162 = smul.u32 64, %s14
          %p163 = scmp.lt.s32.totalorder %s162, 255
          %s164 = scalar_select %p163, %s162, 255
          %s165 = smul.addr %s164, 4
          %s166 = scalar_lea.vmem %s0, %s165
          %s167 = smul.u32 64, %s14
        $region28: #{tpu_custom_call.1} parent=23 // pred_fallthru
          _
      $region24: #{tpu_custom_call.1} parent=5 // pred_fallthru
        _
      %p168 = scmp.le.s32.totalorder 1, %s14
      %p169 = scmp.lt.s32.totalorder %s14, 5
      %p170 = pnand %p168, %p169
      %p171 = pneg %p170
      // Predicated region
      $region29: #{tpu_custom_call.1} parent=5 // pred_check
        _
      $region30: #{tpu_custom_call.1} parent=5 // pred_check_branch
        %173 = sbr.rel (%p170) target = $region32
      $region31: #{tpu_custom_call.1} parent=5 // pred_region
        %s174 = ssub.s32 %s14, 1
        %s175 = smul.u32 64, %s19
        %p176 = scmp.lt.s32.totalorder %s175, 255
        %s177 = scalar_select %p176, %s175, 255
        %s178 = smul.addr %s177, 4
        %s179 = scalar_lea.vmem %s0, %s178
        %p180 = pneg %p40
        %p181 = pneg %p37
        %p182 = pneg %p61
        %p183 = pneg %p58
        %p184 = pneg %p82
        %p185 = pneg %p79
        %p186 = pneg %p108
        %p187 = pneg %p105
        %s188 = smul.u32 64, %s19
        %p189 = scmp.lt.s32.totalorder %s188, 255
        %s190 = scalar_select %p189, %s188, 255
        %s191 = smul.addr %s190, 4
        %s192 = scalar_lea.vmem %s3, %s191
        %p193 = pneg %p134
        %p194 = pneg %p131
        %s195 = sand.u32 %s121, 1
        %s196 = scalar_lea.sflag [#allocation3], %s195
        %s197 = sand.u32 %s121, 1
        %s198 = smul.addr %s197, 8
        %s199 = scalar_lea.vmem [#allocation2], %s198
        %s200 = smul.u32 64, %s19
        %p201 = scmp.lt.s32.totalorder %s200, 255
        %s202 = scalar_select %p201, %s200, 255
        %s203 = smul.addr %s202, 4
        %s204 = scalar_lea.vmem %s0, %s203
        %s205 = smul.u32 64, %s19
        %s206 = smul.u32 64, %s19
        %p207 = scmp.lt.s32.totalorder %s206, 255
        %s208 = scalar_select %p207, %s206, 255
        %s209 = smul.addr %s208, 4
        %s210 = scalar_lea.vmem %s3, %s209
        %s211 = smul.u32 64, %s19
        %v213 = vld [vmem:[%s204] sm:$0xf]
        %v214 = vld [vmem:[%s204 + $0x4] sm:$0xf]
        %v215 = vld [vmem:[%s204 + $0x8] sm:$0xf]
        %v216 = vld [vmem:[%s204 + $0xc] sm:$0xf]
        %v217 = vld [vmem:[%s204 + $0x10] sm:$0xf]
        %v218 = vld [vmem:[%s204 + $0x14] sm:$0xf]
        %v219 = vld [vmem:[%s204 + $0x18] sm:$0xf]
        %v220 = vld [vmem:[%s204 + $0x1c] sm:$0xf]
        %v221 = vld [vmem:[%s204 + $0x20] sm:$0xf]
        %v222 = vld [vmem:[%s204 + $0x24] sm:$0xf]
        %v223 = vld [vmem:[%s204 + $0x28] sm:$0xf]
        %v224 = vld [vmem:[%s204 + $0x2c] sm:$0xf]
        %v225 = vld [vmem:[%s204 + $0x30] sm:$0xf]
        %v226 = vld [vmem:[%s204 + $0x34] sm:$0xf]
        %v227 = vld [vmem:[%s204 + $0x38] sm:$0xf]
        %v228 = vld [vmem:[%s204 + $0x3c] sm:$0xf]
        %v229 = vld [vmem:[%s204 + $0x40] sm:$0xf]
        %v230 = vld [vmem:[%s204 + $0x44] sm:$0xf]
        %v231 = vld [vmem:[%s204 + $0x48] sm:$0xf]
        %v232 = vld [vmem:[%s204 + $0x4c] sm:$0xf]
        %v233 = vld [vmem:[%s204 + $0x50] sm:$0xf]
        %v234 = vld [vmem:[%s204 + $0x54] sm:$0xf]
        %v235 = vld [vmem:[%s204 + $0x58] sm:$0xf]
        %v236 = vld [vmem:[%s204 + $0x5c] sm:$0xf]
        %v237 = vld [vmem:[%s204 + $0x60] sm:$0xf]
        %v238 = vld [vmem:[%s204 + $0x64] sm:$0xf]
        %v239 = vld [vmem:[%s204 + $0x68] sm:$0xf]
        %v240 = vld [vmem:[%s204 + $0x6c] sm:$0xf]
        %v241 = vld [vmem:[%s204 + $0x70] sm:$0xf]
        %v242 = vld [vmem:[%s204 + $0x74] sm:$0xf]
        %v243 = vld [vmem:[%s204 + $0x78] sm:$0xf]
        %v244 = vld [vmem:[%s204 + $0x7c] sm:$0xf]
        %v245 = vld [vmem:[%s204 + $0x80] sm:$0xf]
        %v246 = vld [vmem:[%s204 + $0x84] sm:$0xf]
        %v247 = vld [vmem:[%s204 + $0x88] sm:$0xf]
        %v248 = vld [vmem:[%s204 + $0x8c] sm:$0xf]
        %v249 = vld [vmem:[%s204 + $0x90] sm:$0xf]
        %v250 = vld [vmem:[%s204 + $0x94] sm:$0xf]
        %v251 = vld [vmem:[%s204 + $0x98] sm:$0xf]
        %v252 = vld [vmem:[%s204 + $0x9c] sm:$0xf]
        %v253 = vld [vmem:[%s204 + $0xa0] sm:$0xf]
        %v254 = vld [vmem:[%s204 + $0xa4] sm:$0xf]
        %v255 = vld [vmem:[%s204 + $0xa8] sm:$0xf]
        %v256 = vld [vmem:[%s204 + $0xac] sm:$0xf]
        %v257 = vld [vmem:[%s204 + $0xb0] sm:$0xf]
        %v258 = vld [vmem:[%s204 + $0xb4] sm:$0xf]
        %v259 = vld [vmem:[%s204 + $0xb8] sm:$0xf]
        %v260 = vld [vmem:[%s204 + $0xbc] sm:$0xf]
        %v261 = vld [vmem:[%s204 + $0xc0] sm:$0xf]
        %v262 = vld [vmem:[%s204 + $0xc4] sm:$0xf]
        %v263 = vld [vmem:[%s204 + $0xc8] sm:$0xf]
        %v264 = vld [vmem:[%s204 + $0xcc] sm:$0xf]
        %v265 = vld [vmem:[%s204 + $0xd0] sm:$0xf]
        %v266 = vld [vmem:[%s204 + $0xd4] sm:$0xf]
        %v267 = vld [vmem:[%s204 + $0xd8] sm:$0xf]
        %v268 = vld [vmem:[%s204 + $0xdc] sm:$0xf]
        %v269 = vld [vmem:[%s204 + $0xe0] sm:$0xf]
        %v270 = vld [vmem:[%s204 + $0xe4] sm:$0xf]
        %v271 = vld [vmem:[%s204 + $0xe8] sm:$0xf]
        %v272 = vld [vmem:[%s204 + $0xec] sm:$0xf]
        %v273 = vld [vmem:[%s204 + $0xf0] sm:$0xf]
        %v274 = vld [vmem:[%s204 + $0xf4] sm:$0xf]
        %v275 = vld [vmem:[%s204 + $0xf8] sm:$0xf]
        %v276 = vld [vmem:[%s204 + $0xfc] sm:$0xf]
        %v277 = vld [vmem:[%s1] sm:$0xf]
        %v278 = vld [vmem:[%s1 + $0x4] sm:$0xf]
        %v279 = vld [vmem:[%s1 + $0x8] sm:$0xf]
        %v280 = vld [vmem:[%s1 + $0xc] sm:$0x3]
        %v281 = vld [vmem:[%s2] sm:$0x1]
        %v283 = vlaneseq
        %v284 = vshrl.u32 %v283, 7
        %v285 = vsub.s32 0, %v284
        %v286 = vrot.slane %v281, %v285
        %v352 = vunpack.c.l.b16 %v213
        %v353 = vunpack.c.l.b16 %v214
        %v354 = vunpack.c.l.b16 %v215
        %v355 = vunpack.c.l.b16 %v216
        %v356 = vunpack.c.l.b16 %v217
        %v357 = vunpack.c.l.b16 %v218
        %v358 = vunpack.c.l.b16 %v219
        %v359 = vunpack.c.l.b16 %v220
        %v360 = vunpack.c.l.b16 %v221
        %v361 = vunpack.c.l.b16 %v222
        %v362 = vunpack.c.l.b16 %v223
        %v363 = vunpack.c.l.b16 %v224
        %v364 = vunpack.c.l.b16 %v225
        %v365 = vunpack.c.l.b16 %v226
        %v366 = vunpack.c.l.b16 %v227
        %v367 = vunpack.c.l.b16 %v228
        %v368 = vunpack.c.l.b16 %v229
        %v369 = vunpack.c.l.b16 %v230
        %v370 = vunpack.c.l.b16 %v231
        %v371 = vunpack.c.l.b16 %v232
        %v372 = vunpack.c.l.b16 %v233
        %v373 = vunpack.c.l.b16 %v234
        %v374 = vunpack.c.l.b16 %v235
        %v375 = vunpack.c.l.b16 %v236
        %v376 = vunpack.c.l.b16 %v237
        %v377 = vunpack.c.l.b16 %v238
        %v378 = vunpack.c.l.b16 %v239
        %v379 = vunpack.c.l.b16 %v240
        %v380 = vunpack.c.l.b16 %v241
        %v381 = vunpack.c.l.b16 %v242
        %v382 = vunpack.c.l.b16 %v243
        %v383 = vunpack.c.l.b16 %v244
        %v384 = vunpack.c.l.b16 %v245
        %v385 = vunpack.c.l.b16 %v246
        %v386 = vunpack.c.l.b16 %v247
        %v387 = vunpack.c.l.b16 %v248
        %v388 = vunpack.c.l.b16 %v249
        %v389 = vunpack.c.l.b16 %v250
        %v390 = vunpack.c.l.b16 %v251
        %v391 = vunpack.c.l.b16 %v252
        %v392 = vunpack.c.l.b16 %v253
        %v393 = vunpack.c.l.b16 %v254
        %v394 = vunpack.c.l.b16 %v255
        %v395 = vunpack.c.l.b16 %v256
        %v396 = vunpack.c.l.b16 %v257
        %v397 = vunpack.c.l.b16 %v258
        %v398 = vunpack.c.l.b16 %v259
        %v399 = vunpack.c.l.b16 %v260
        %v400 = vunpack.c.l.b16 %v261
        %v401 = vunpack.c.l.b16 %v262
        %v402 = vunpack.c.l.b16 %v263
        %v403 = vunpack.c.l.b16 %v264
        %v404 = vunpack.c.l.b16 %v265
        %v405 = vunpack.c.l.b16 %v266
        %v406 = vunpack.c.l.b16 %v267
        %v407 = vunpack.c.l.b16 %v268
        %v408 = vunpack.c.l.b16 %v269
        %v409 = vunpack.c.l.b16 %v270
        %v410 = vunpack.c.l.b16 %v271
        %v411 = vunpack.c.l.b16 %v272
        %v412 = vunpack.c.l.b16 %v273
        %v413 = vunpack.c.l.b16 %v274
        %v414 = vunpack.c.l.b16 %v275
        %v415 = vunpack.c.l.b16 %v276
        %v416 = vpack.c.b16 %v353, %v352
        %v417 = vpack.c.b16 %v355, %v354
        %v418 = vpack.c.b16 %v357, %v356
        %v419 = vpack.c.b16 %v359, %v358
        %v420 = vpack.c.b16 %v361, %v360
        %v421 = vpack.c.b16 %v363, %v362
        %v422 = vpack.c.b16 %v365, %v364
        %v423 = vpack.c.b16 %v367, %v366
        %v424 = vpack.c.b16 %v369, %v368
        %v425 = vpack.c.b16 %v371, %v370
        %v426 = vpack.c.b16 %v373, %v372
        %v427 = vpack.c.b16 %v375, %v374
        %v428 = vpack.c.b16 %v377, %v376
        %v429 = vpack.c.b16 %v379, %v378
        %v430 = vpack.c.b16 %v381, %v380
        %v431 = vpack.c.b16 %v383, %v382
        %v432 = vpack.c.b16 %v385, %v384
        %v433 = vpack.c.b16 %v387, %v386
        %v434 = vpack.c.b16 %v389, %v388
        %v435 = vpack.c.b16 %v391, %v390
        %v436 = vpack.c.b16 %v393, %v392
        %v437 = vpack.c.b16 %v395, %v394
        %v438 = vpack.c.b16 %v397, %v396
        %v439 = vpack.c.b16 %v399, %v398
        %v440 = vpack.c.b16 %v401, %v400
        %v441 = vpack.c.b16 %v403, %v402
        %v442 = vpack.c.b16 %v405, %v404
        %v443 = vpack.c.b16 %v407, %v406
        %v444 = vpack.c.b16 %v409, %v408
        %v445 = vpack.c.b16 %v411, %v410
        %v446 = vpack.c.b16 %v413, %v412
        %v447 = vpack.c.b16 %v415, %v414
        %v452 = vunpack.c.l.b16 %v277
        %v453 = vunpack.c.l.b16 %v278
        %v454 = vunpack.c.l.b16 %v279
        %v455 = vunpack.c.l.b16 %v280
        %v456 = vpack.c.b16 %v453, %v452
        %v457 = vpack.c.b16 %v455, %v454
        %vm459 = vcmask 220160
        %v461 = vsel %vm459, %v416, 0
        %v464 = vsel %vm459, %v417, 0
        %v467 = vsel %vm459, %v418, 0
        %v470 = vsel %vm459, %v419, 0
        %v473 = vsel %vm459, %v420, 0
        %v476 = vsel %vm459, %v421, 0
        %v479 = vsel %vm459, %v422, 0
        %v482 = vsel %vm459, %v423, 0
        %v485 = vsel %vm459, %v424, 0
        %v488 = vsel %vm459, %v425, 0
        %v491 = vsel %vm459, %v426, 0
        %v494 = vsel %vm459, %v427, 0
        %v497 = vsel %vm459, %v428, 0
        %v500 = vsel %vm459, %v429, 0
        %v503 = vsel %vm459, %v430, 0
        %v506 = vsel %vm459, %v431, 0
        %v509 = vsel %vm459, %v432, 0
        %v512 = vsel %vm459, %v433, 0
        %v515 = vsel %vm459, %v434, 0
        %v518 = vsel %vm459, %v435, 0
        %v521 = vsel %vm459, %v436, 0
        %v524 = vsel %vm459, %v437, 0
        %v527 = vsel %vm459, %v438, 0
        %v530 = vsel %vm459, %v439, 0
        %v533 = vsel %vm459, %v440, 0
        %v536 = vsel %vm459, %v441, 0
        %v539 = vsel %vm459, %v442, 0
        %v542 = vsel %vm459, %v443, 0
        %v545 = vsel %vm459, %v444, 0
        %v548 = vsel %vm459, %v445, 0
        %v551 = vsel %vm459, %v446, 0
        %v554 = vsel %vm459, %v447, 0
        %vm556 = vcmask 1044480
        %vm557 = vcmask 1045504
        %v558 = vsel %vm556, 4294967295, 65535
        %v559 = vsel %vm557, %v558, 0
        %v561 = vand.u32 %v457, %v559
        %563 = vmatprep.subr.bf16.mxu0 0
        %564 = vmatpush1.bf16.msra.mxu0 %v456
        %565 = vmatprep.subr.bf16.mxu0 0
        %566 = vmatpush1.bf16.msra.mxu0 %v561
        %567 = vmatprep.subr.bf16.mxu0 0
        %568 = vmatpush1.bf16.msra.mxu0 0
        %569 = vmatprep.subr.bf16.mxu0 0
        %570 = vmatpush1.bf16.msra.mxu0 0
        %571 = vmatprep.subr.bf16.mxu0 0
        %572 = vmatpush1.bf16.msra.mxu0 0
        %573 = vmatprep.subr.bf16.mxu0 0
        %574 = vmatpush1.bf16.msra.mxu0 0
        %575 = vmatprep.subr.bf16.mxu0 0
        %576 = vmatpush1.bf16.msra.mxu0 0
        %577 = vmatprep.subr.bf16.mxu0 0
        %578 = vmatpush1.bf16.msra.mxu0 0
        %579 = vmatprep.subr.bf16.mxu0 0
        %580 = vmatpush1.bf16.msra.mxu0 0
        %581 = vmatprep.subr.bf16.mxu0 0
        %582 = vmatpush1.bf16.msra.mxu0 0
        %583 = vmatprep.subr.bf16.mxu0 0
        %584 = vmatpush1.bf16.msra.mxu0 0
        %585 = vmatprep.subr.bf16.mxu0 0
        %586 = vmatpush1.bf16.msra.mxu0 0
        %587 = vmatprep.subr.bf16.mxu0 0
        %588 = vmatpush1.bf16.msra.mxu0 0
        %589 = vmatprep.subr.bf16.mxu0 0
        %590 = vmatpush1.bf16.msra.mxu0 0
        %591 = vmatprep.subr.bf16.mxu0 0
        %592 = vmatpush1.bf16.msra.mxu0 0
        %593 = vmatprep.subr.bf16.mxu0 0
        %594 = vmatpush1.bf16.msra.mxu0 0
        %595 = vmatprep.mubr.bf16.mxu0 0
        %596 = vmatmul.mubr.bf16.gmra.mrb[0].mxu0 %v461
        %v597 = vpop.f32.mrb[0].mxu0
        %v598 = vadd.f32 %v286, %v597
        %v599 = vpop.f32.mrb[0].mxu0
        %v600 = vpop.f32.mrb[0].mxu0
        %v601 = vadd.f32 %v286, %v600
        %v602 = vpop.f32.mrb[0].mxu0
        %603 = vmatprep.mubr.bf16.mxu0 0
        %604 = vmatmul.mubr.bf16.gmra.mrb[0].mxu0 %v464
        %v605 = vpop.f32.mrb[0].mxu0
        %v606 = vadd.f32 %v286, %v605
        %v607 = vpop.f32.mrb[0].mxu0
        %v608 = vpop.f32.mrb[0].mxu0
        %v609 = vadd.f32 %v286, %v608
        %v610 = vpop.f32.mrb[0].mxu0
        %611 = vmatprep.mubr.bf16.mxu0 0
        %612 = vmatmul.mubr.bf16.gmra.mrb[0].mxu0 %v467
        %v613 = vpop.f32.mrb[0].mxu0
        %v614 = vadd.f32 %v286, %v613
        %v615 = vpop.f32.mrb[0].mxu0
        %v616 = vpop.f32.mrb[0].mxu0
        %v617 = vadd.f32 %v286, %v616
        %v618 = vpop.f32.mrb[0].mxu0
        %619 = vmatprep.mubr.bf16.mxu0 0
        %620 = vmatmul.mubr.bf16.gmra.mrb[0].mxu0 %v470
        %v621 = vpop.f32.mrb[0].mxu0
        %v622 = vadd.f32 %v286, %v621
        %v623 = vpop.f32.mrb[0].mxu0
        %v624 = vpop.f32.mrb[0].mxu0
        %v625 = vadd.f32 %v286, %v624
        %v626 = vpop.f32.mrb[0].mxu0
        %627 = vmatprep.mubr.bf16.mxu0 0
        %628 = vmatmul.mubr.bf16.gmra.mrb[0].mxu0 %v473
        %v629 = vpop.f32.mrb[0].mxu0
        %v630 = vadd.f32 %v286, %v629
        %v631 = vpop.f32.mrb[0].mxu0
        %v632 = vpop.f32.mrb[0].mxu0
        %v633 = vadd.f32 %v286, %v632
        %v634 = vpop.f32.mrb[0].mxu0
        %635 = vmatprep.mubr.bf16.mxu0 0
        %636 = vmatmul.mubr.bf16.gmra.mrb[0].mxu0 %v476
        %v637 = vpop.f32.mrb[0].mxu0
        %v638 = vadd.f32 %v286, %v637
        %v639 = vpop.f32.mrb[0].mxu0
        %v640 = vpop.f32.mrb[0].mxu0
        %v641 = vadd.f32 %v286, %v640
        %v642 = vpop.f32.mrb[0].mxu0
        %643 = vmatprep.mubr.bf16.mxu0 0
        %644 = vmatmul.mubr.bf16.gmra.mrb[0].mxu0 %v479
        %v645 = vpop.f32.mrb[0].mxu0
        %v646 = vadd.f32 %v286, %v645
        %v647 = vpop.f32.mrb[0].mxu0
        %v648 = vpop.f32.mrb[0].mxu0
        %v649 = vadd.f32 %v286, %v648
        %v650 = vpop.f32.mrb[0].mxu0
        %651 = vmatprep.mubr.bf16.mxu0 0
        %652 = vmatmul.mubr.bf16.gmra.mrb[0].mxu0 %v482
        %v653 = vpop.f32.mrb[0].mxu0
        %v654 = vadd.f32 %v286, %v653
        %v655 = vpop.f32.mrb[0].mxu0
        %v656 = vpop.f32.mrb[0].mxu0
        %v657 = vadd.f32 %v286, %v656
        %v658 = vpop.f32.mrb[0].mxu0
        %659 = vmatprep.mubr.bf16.mxu0 0
        %660 = vmatmul.mubr.bf16.gmra.mrb[0].mxu0 %v485
        %v661 = vpop.f32.mrb[0].mxu0
        %v662 = vadd.f32 %v286, %v661
        %v663 = vpop.f32.mrb[0].mxu0
        %v664 = vpop.f32.mrb[0].mxu0
        %v665 = vadd.f32 %v286, %v664
        %v666 = vpop.f32.mrb[0].mxu0
        %667 = vmatprep.mubr.bf16.mxu0 0
        %668 = vmatmul.mubr.bf16.gmra.mrb[0].mxu0 %v488
        %v669 = vpop.f32.mrb[0].mxu0
        %v670 = vadd.f32 %v286, %v669
        %v671 = vpop.f32.mrb[0].mxu0
        %v672 = vpop.f32.mrb[0].mxu0
        %v673 = vadd.f32 %v286, %v672
        %v674 = vpop.f32.mrb[0].mxu0
        %675 = vmatprep.mubr.bf16.mxu0 0
        %676 = vmatmul.mubr.bf16.gmra.mrb[0].mxu0 %v491
        %v677 = vpop.f32.mrb[0].mxu0
        %v678 = vadd.f32 %v286, %v677
        %v679 = vpop.f32.mrb[0].mxu0
        %v680 = vpop.f32.mrb[0].mxu0
        %v681 = vadd.f32 %v286, %v680
        %v682 = vpop.f32.mrb[0].mxu0
        %683 = vmatprep.mubr.bf16.mxu0 0
        %684 = vmatmul.mubr.bf16.gmra.mrb[0].mxu0 %v494
        %v685 = vpop.f32.mrb[0].mxu0
        %v686 = vadd.f32 %v286, %v685
        %v687 = vpop.f32.mrb[0].mxu0
        %v688 = vpop.f32.mrb[0].mxu0
        %v689 = vadd.f32 %v286, %v688
        %v690 = vpop.f32.mrb[0].mxu0
        %691 = vmatprep.mubr.bf16.mxu0 0
        %692 = vmatmul.mubr.bf16.gmra.mrb[0].mxu0 %v497
        %v693 = vpop.f32.mrb[0].mxu0
        %v694 = vadd.f32 %v286, %v693
        %v695 = vpop.f32.mrb[0].mxu0
        %v696 = vpop.f32.mrb[0].mxu0
        %v697 = vadd.f32 %v286, %v696
        %v698 = vpop.f32.mrb[0].mxu0
        %699 = vmatprep.mubr.bf16.mxu0 0
        %700 = vmatmul.mubr.bf16.gmra.mrb[0].mxu0 %v500
        %v701 = vpop.f32.mrb[0].mxu0
        %v702 = vadd.f32 %v286, %v701
        %v703 = vpop.f32.mrb[0].mxu0
        %v704 = vpop.f32.mrb[0].mxu0
        %v705 = vadd.f32 %v286, %v704
        %v706 = vpop.f32.mrb[0].mxu0
        %707 = vmatprep.mubr.bf16.mxu0 0
        %708 = vmatmul.mubr.bf16.gmra.mrb[0].mxu0 %v503
        %v709 = vpop.f32.mrb[0].mxu0
        %v710 = vadd.f32 %v286, %v709
        %v711 = vpop.f32.mrb[0].mxu0
        %v712 = vpop.f32.mrb[0].mxu0
        %v713 = vadd.f32 %v286, %v712
        %v714 = vpop.f32.mrb[0].mxu0
        %715 = vmatprep.mubr.bf16.mxu0 0
        %716 = vmatmul.mubr.bf16.gmra.mrb[0].mxu0 %v506
        %v717 = vpop.f32.mrb[0].mxu0
        %v718 = vadd.f32 %v286, %v717
        %v719 = vpop.f32.mrb[0].mxu0
        %v720 = vpop.f32.mrb[0].mxu0
        %v721 = vadd.f32 %v286, %v720
        %v722 = vpop.f32.mrb[0].mxu0
        %723 = vmatprep.mubr.bf16.mxu0 0
        %724 = vmatmul.mubr.bf16.gmra.mrb[0].mxu0 %v509
        %v725 = vpop.f32.mrb[0].mxu0
        %v726 = vadd.f32 %v286, %v725
        %v727 = vpop.f32.mrb[0].mxu0
        %v728 = vpop.f32.mrb[0].mxu0
        %v729 = vadd.f32 %v286, %v728
        %v730 = vpop.f32.mrb[0].mxu0
        %731 = vmatprep.mubr.bf16.mxu0 0
        %732 = vmatmul.mubr.bf16.gmra.mrb[0].mxu0 %v512
        %v733 = vpop.f32.mrb[0].mxu0
        %v734 = vadd.f32 %v286, %v733
        %v735 = vpop.f32.mrb[0].mxu0
        %v736 = vpop.f32.mrb[0].mxu0
        %v737 = vadd.f32 %v286, %v736
        %v738 = vpop.f32.mrb[0].mxu0
        %739 = vmatprep.mubr.bf16.mxu0 0
        %740 = vmatmul.mubr.bf16.gmra.mrb[0].mxu0 %v515
        %v741 = vpop.f32.mrb[0].mxu0
        %v742 = vadd.f32 %v286, %v741
        %v743 = vpop.f32.mrb[0].mxu0
        %v744 = vpop.f32.mrb[0].mxu0
        %v745 = vadd.f32 %v286, %v744
        %v746 = vpop.f32.mrb[0].mxu0
        %747 = vmatprep.mubr.bf16.mxu0 0
        %748 = vmatmul.mubr.bf16.gmra.mrb[0].mxu0 %v518
        %v749 = vpop.f32.mrb[0].mxu0
        %v750 = vadd.f32 %v286, %v749
        %v751 = vpop.f32.mrb[0].mxu0
        %v752 = vpop.f32.mrb[0].mxu0
        %v753 = vadd.f32 %v286, %v752
        %v754 = vpop.f32.mrb[0].mxu0
        %755 = vmatprep.mubr.bf16.mxu0 0
        %756 = vmatmul.mubr.bf16.gmra.mrb[0].mxu0 %v521
        %v757 = vpop.f32.mrb[0].mxu0
        %v758 = vadd.f32 %v286, %v757
        %v759 = vpop.f32.mrb[0].mxu0
        %v760 = vpop.f32.mrb[0].mxu0
        %v761 = vadd.f32 %v286, %v760
        %v762 = vpop.f32.mrb[0].mxu0
        %763 = vmatprep.mubr.bf16.mxu0 0
        %764 = vmatmul.mubr.bf16.gmra.mrb[0].mxu0 %v524
        %v765 = vpop.f32.mrb[0].mxu0
        %v766 = vadd.f32 %v286, %v765
        %v767 = vpop.f32.mrb[0].mxu0
        %v768 = vpop.f32.mrb[0].mxu0
        %v769 = vadd.f32 %v286, %v768
        %v770 = vpop.f32.mrb[0].mxu0
        %771 = vmatprep.mubr.bf16.mxu0 0
        %772 = vmatmul.mubr.bf16.gmra.mrb[0].mxu0 %v527
        %v773 = vpop.f32.mrb[0].mxu0
        %v774 = vadd.f32 %v286, %v773
        %v775 = vpop.f32.mrb[0].mxu0
        %v776 = vpop.f32.mrb[0].mxu0
        %v777 = vadd.f32 %v286, %v776
        %v778 = vpop.f32.mrb[0].mxu0
        %779 = vmatprep.mubr.bf16.mxu0 0
        %780 = vmatmul.mubr.bf16.gmra.mrb[0].mxu0 %v530
        %v781 = vpop.f32.mrb[0].mxu0
        %v782 = vadd.f32 %v286, %v781
        %v783 = vpop.f32.mrb[0].mxu0
        %v784 = vpop.f32.mrb[0].mxu0
        %v785 = vadd.f32 %v286, %v784
        %v786 = vpop.f32.mrb[0].mxu0
        %787 = vmatprep.mubr.bf16.mxu0 0
        %788 = vmatmul.mubr.bf16.gmra.mrb[0].mxu0 %v533
        %v789 = vpop.f32.mrb[0].mxu0
        %v790 = vadd.f32 %v286, %v789
        %v791 = vpop.f32.mrb[0].mxu0
        %v792 = vpop.f32.mrb[0].mxu0
        %v793 = vadd.f32 %v286, %v792
        %v794 = vpop.f32.mrb[0].mxu0
        %795 = vmatprep.mubr.bf16.mxu0 0
        %796 = vmatmul.mubr.bf16.gmra.mrb[0].mxu0 %v536
        %v797 = vpop.f32.mrb[0].mxu0
        %v798 = vadd.f32 %v286, %v797
        %v799 = vpop.f32.mrb[0].mxu0
        %v800 = vpop.f32.mrb[0].mxu0
        %v801 = vadd.f32 %v286, %v800
        %v802 = vpop.f32.mrb[0].mxu0
        %803 = vmatprep.mubr.bf16.mxu0 0
        %804 = vmatmul.mubr.bf16.gmra.mrb[0].mxu0 %v539
        %v805 = vpop.f32.mrb[0].mxu0
        %v806 = vadd.f32 %v286, %v805
        %v807 = vpop.f32.mrb[0].mxu0
        %v808 = vpop.f32.mrb[0].mxu0
        %v809 = vadd.f32 %v286, %v808
        %v810 = vpop.f32.mrb[0].mxu0
        %811 = vmatprep.mubr.bf16.mxu0 0
        %812 = vmatmul.mubr.bf16.gmra.mrb[0].mxu0 %v542
        %v813 = vpop.f32.mrb[0].mxu0
        %v814 = vadd.f32 %v286, %v813
        %v815 = vpop.f32.mrb[0].mxu0
        %v816 = vpop.f32.mrb[0].mxu0
        %v817 = vadd.f32 %v286, %v816
        %v818 = vpop.f32.mrb[0].mxu0
        %819 = vmatprep.mubr.bf16.mxu0 0
        %820 = vmatmul.mubr.bf16.gmra.mrb[0].mxu0 %v545
        %v821 = vpop.f32.mrb[0].mxu0
        %v822 = vadd.f32 %v286, %v821
        %v823 = vpop.f32.mrb[0].mxu0
        %v824 = vpop.f32.mrb[0].mxu0
        %v825 = vadd.f32 %v286, %v824
        %v826 = vpop.f32.mrb[0].mxu0
        %827 = vmatprep.mubr.bf16.mxu0 0
        %828 = vmatmul.mubr.bf16.gmra.mrb[0].mxu0 %v548
        %v829 = vpop.f32.mrb[0].mxu0
        %v830 = vadd.f32 %v286, %v829
        %v831 = vpop.f32.mrb[0].mxu0
        %v832 = vpop.f32.mrb[0].mxu0
        %v833 = vadd.f32 %v286, %v832
        %v834 = vpop.f32.mrb[0].mxu0
        %835 = vmatprep.mubr.bf16.mxu0 0
        %836 = vmatmul.mubr.bf16.gmra.mrb[0].mxu0 %v551
        %v837 = vpop.f32.mrb[0].mxu0
        %v838 = vadd.f32 %v286, %v837
        %v839 = vpop.f32.mrb[0].mxu0
        %v840 = vpop.f32.mrb[0].mxu0
        %v841 = vadd.f32 %v286, %v840
        %v842 = vpop.f32.mrb[0].mxu0
        %843 = vmatprep.mubr.bf16.mxu0 0
        %844 = vmatmul.mubr.bf16.gmra.mrb[0].mxu0 %v554
        %v845 = vpop.f32.mrb[0].mxu0
        %v846 = vadd.f32 %v286, %v845
        %v847 = vpop.f32.mrb[0].mxu0
        %v848 = vpop.f32.mrb[0].mxu0
        %v849 = vadd.f32 %v286, %v848
        %v850 = vpop.f32.mrb[0].mxu0
        %851 = vdwg.mxu0
        %v852 = vmax.f32 %v598, 0.0
        %v853 = vmax.f32 %v601, 0.0
        %v854 = vmax.f32 %v606, 0.0
        %v855 = vmax.f32 %v609, 0.0
        %v856 = vmax.f32 %v614, 0.0
        %v857 = vmax.f32 %v617, 0.0
        %v858 = vmax.f32 %v622, 0.0
        %v859 = vmax.f32 %v625, 0.0
        %v860 = vmax.f32 %v630, 0.0
        %v861 = vmax.f32 %v633, 0.0
        %v862 = vmax.f32 %v638, 0.0
        %v863 = vmax.f32 %v641, 0.0
        %v864 = vmax.f32 %v646, 0.0
        %v865 = vmax.f32 %v649, 0.0
        %v866 = vmax.f32 %v654, 0.0
        %v867 = vmax.f32 %v657, 0.0
        %v868 = vmax.f32 %v662, 0.0
        %v869 = vmax.f32 %v665, 0.0
        %v870 = vmax.f32 %v670, 0.0
        %v871 = vmax.f32 %v673, 0.0
        %v872 = vmax.f32 %v678, 0.0
        %v873 = vmax.f32 %v681, 0.0
        %v874 = vmax.f32 %v686, 0.0
        %v875 = vmax.f32 %v689, 0.0
        %v876 = vmax.f32 %v694, 0.0
        %v877 = vmax.f32 %v697, 0.0
        %v878 = vmax.f32 %v702, 0.0
        %v879 = vmax.f32 %v705, 0.0
        %v880 = vmax.f32 %v710, 0.0
        %v881 = vmax.f32 %v713, 0.0
        %v882 = vmax.f32 %v718, 0.0
        %v883 = vmax.f32 %v721, 0.0
        %v884 = vmax.f32 %v726, 0.0
        %v885 = vmax.f32 %v729, 0.0
        %v886 = vmax.f32 %v734, 0.0
        %v887 = vmax.f32 %v737, 0.0
        %v888 = vmax.f32 %v742, 0.0
        %v889 = vmax.f32 %v745, 0.0
        %v890 = vmax.f32 %v750, 0.0
        %v891 = vmax.f32 %v753, 0.0
        %v892 = vmax.f32 %v758, 0.0
        %v893 = vmax.f32 %v761, 0.0
        %v894 = vmax.f32 %v766, 0.0
        %v895 = vmax.f32 %v769, 0.0
        %v896 = vmax.f32 %v774, 0.0
        %v897 = vmax.f32 %v777, 0.0
        %v898 = vmax.f32 %v782, 0.0
        %v899 = vmax.f32 %v785, 0.0
        %v900 = vmax.f32 %v790, 0.0
        %v901 = vmax.f32 %v793, 0.0
        %v902 = vmax.f32 %v798, 0.0
        %v903 = vmax.f32 %v801, 0.0
        %v904 = vmax.f32 %v806, 0.0
        %v905 = vmax.f32 %v809, 0.0
        %v906 = vmax.f32 %v814, 0.0
        %v907 = vmax.f32 %v817, 0.0
        %v908 = vmax.f32 %v822, 0.0
        %v909 = vmax.f32 %v825, 0.0
        %v910 = vmax.f32 %v830, 0.0
        %v911 = vmax.f32 %v833, 0.0
        %v912 = vmax.f32 %v838, 0.0
        %v913 = vmax.f32 %v841, 0.0
        %v914 = vmax.f32 %v846, 0.0
        %v915 = vmax.f32 %v849, 0.0
        %v916 = vpack.c.bf16 %v853, %v852
        %v917 = vpack.c.bf16 %v855, %v854
        %v918 = vpack.c.bf16 %v857, %v856
        %v919 = vpack.c.bf16 %v859, %v858
        %v920 = vpack.c.bf16 %v861, %v860
        %v921 = vpack.c.bf16 %v863, %v862
        %v922 = vpack.c.bf16 %v865, %v864
        %v923 = vpack.c.bf16 %v867, %v866
        %v924 = vpack.c.bf16 %v869, %v868
        %v925 = vpack.c.bf16 %v871, %v870
        %v926 = vpack.c.bf16 %v873, %v872
        %v927 = vpack.c.bf16 %v875, %v874
        %v928 = vpack.c.bf16 %v877, %v876
        %v929 = vpack.c.bf16 %v879, %v878
        %v930 = vpack.c.bf16 %v881, %v880
        %v931 = vpack.c.bf16 %v883, %v882
        %v932 = vpack.c.bf16 %v885, %v884
        %v933 = vpack.c.bf16 %v887, %v886
        %v934 = vpack.c.bf16 %v889, %v888
        %v935 = vpack.c.bf16 %v891, %v890
        %v936 = vpack.c.bf16 %v893, %v892
        %v937 = vpack.c.bf16 %v895, %v894
        %v938 = vpack.c.bf16 %v897, %v896
        %v939 = vpack.c.bf16 %v899, %v898
        %v940 = vpack.c.bf16 %v901, %v900
        %v941 = vpack.c.bf16 %v903, %v902
        %v942 = vpack.c.bf16 %v905, %v904
        %v943 = vpack.c.bf16 %v907, %v906
        %v944 = vpack.c.bf16 %v909, %v908
        %v945 = vpack.c.bf16 %v911, %v910
        %v946 = vpack.c.bf16 %v913, %v912
        %v947 = vpack.c.bf16 %v915, %v914
        %v980 = vunpack.c.l.b16 %v916
        %v981 = vunpack.c.h.b16 %v916
        %v982 = vunpack.c.l.b16 %v917
        %v983 = vunpack.c.h.b16 %v917
        %v984 = vunpack.c.l.b16 %v918
        %v985 = vunpack.c.h.b16 %v918
        %v986 = vunpack.c.l.b16 %v919
        %v987 = vunpack.c.h.b16 %v919
        %v988 = vunpack.c.l.b16 %v920
        %v989 = vunpack.c.h.b16 %v920
        %v990 = vunpack.c.l.b16 %v921
        %v991 = vunpack.c.h.b16 %v921
        %v992 = vunpack.c.l.b16 %v922
        %v993 = vunpack.c.h.b16 %v922
        %v994 = vunpack.c.l.b16 %v923
        %v995 = vunpack.c.h.b16 %v923
        %v996 = vunpack.c.l.b16 %v924
        %v997 = vunpack.c.h.b16 %v924
        %v998 = vunpack.c.l.b16 %v925
        %v999 = vunpack.c.h.b16 %v925
        %v1000 = vunpack.c.l.b16 %v926
        %v1001 = vunpack.c.h.b16 %v926
        %v1002 = vunpack.c.l.b16 %v927
        %v1003 = vunpack.c.h.b16 %v927
        %v1004 = vunpack.c.l.b16 %v928
        %v1005 = vunpack.c.h.b16 %v928
        %v1006 = vunpack.c.l.b16 %v929
        %v1007 = vunpack.c.h.b16 %v929
        %v1008 = vunpack.c.l.b16 %v930
        %v1009 = vunpack.c.h.b16 %v930
        %v1010 = vunpack.c.l.b16 %v931
        %v1011 = vunpack.c.h.b16 %v931
        %v1012 = vunpack.c.l.b16 %v932
        %v1013 = vunpack.c.h.b16 %v932
        %v1014 = vunpack.c.l.b16 %v933
        %v1015 = vunpack.c.h.b16 %v933
        %v1016 = vunpack.c.l.b16 %v934
        %v1017 = vunpack.c.h.b16 %v934
        %v1018 = vunpack.c.l.b16 %v935
        %v1019 = vunpack.c.h.b16 %v935
        %v1020 = vunpack.c.l.b16 %v936
        %v1021 = vunpack.c.h.b16 %v936
        %v1022 = vunpack.c.l.b16 %v937
        %v1023 = vunpack.c.h.b16 %v937
        %v1024 = vunpack.c.l.b16 %v938
        %v1025 = vunpack.c.h.b16 %v938
        %v1026 = vunpack.c.l.b16 %v939
        %v1027 = vunpack.c.h.b16 %v939
        %v1028 = vunpack.c.l.b16 %v940
        %v1029 = vunpack.c.h.b16 %v940
        %v1030 = vunpack.c.l.b16 %v941
        %v1031 = vunpack.c.h.b16 %v941
        %v1032 = vunpack.c.l.b16 %v942
        %v1033 = vunpack.c.h.b16 %v942
        %v1034 = vunpack.c.l.b16 %v943
        %v1035 = vunpack.c.h.b16 %v943
        %v1036 = vunpack.c.l.b16 %v944
        %v1037 = vunpack.c.h.b16 %v944
        %v1038 = vunpack.c.l.b16 %v945
        %v1039 = vunpack.c.h.b16 %v945
        %v1040 = vunpack.c.l.b16 %v946
        %v1041 = vunpack.c.h.b16 %v946
        %v1042 = vunpack.c.l.b16 %v947
        %v1043 = vunpack.c.h.b16 %v947
        %v1044 = vpack.c.b16 %v980, %v980
        %v1045 = vpack.c.b16 %v981, %v981
        %v1046 = vpack.c.b16 %v982, %v982
        %v1047 = vpack.c.b16 %v983, %v983
        %v1048 = vpack.c.b16 %v984, %v984
        %v1049 = vpack.c.b16 %v985, %v985
        %v1050 = vpack.c.b16 %v986, %v986
        %v1051 = vpack.c.b16 %v987, %v987
        %v1052 = vpack.c.b16 %v988, %v988
        %v1053 = vpack.c.b16 %v989, %v989
        %v1054 = vpack.c.b16 %v990, %v990
        %v1055 = vpack.c.b16 %v991, %v991
        %v1056 = vpack.c.b16 %v992, %v992
        %v1057 = vpack.c.b16 %v993, %v993
        %v1058 = vpack.c.b16 %v994, %v994
        %v1059 = vpack.c.b16 %v995, %v995
        %v1060 = vpack.c.b16 %v996, %v996
        %v1061 = vpack.c.b16 %v997, %v997
        %v1062 = vpack.c.b16 %v998, %v998
        %v1063 = vpack.c.b16 %v999, %v999
        %v1064 = vpack.c.b16 %v1000, %v1000
        %v1065 = vpack.c.b16 %v1001, %v1001
        %v1066 = vpack.c.b16 %v1002, %v1002
        %v1067 = vpack.c.b16 %v1003, %v1003
        %v1068 = vpack.c.b16 %v1004, %v1004
        %v1069 = vpack.c.b16 %v1005, %v1005
        %v1070 = vpack.c.b16 %v1006, %v1006
        %v1071 = vpack.c.b16 %v1007, %v1007
        %v1072 = vpack.c.b16 %v1008, %v1008
        %v1073 = vpack.c.b16 %v1009, %v1009
        %v1074 = vpack.c.b16 %v1010, %v1010
        %v1075 = vpack.c.b16 %v1011, %v1011
        %v1076 = vpack.c.b16 %v1012, %v1012
        %v1077 = vpack.c.b16 %v1013, %v1013
        %v1078 = vpack.c.b16 %v1014, %v1014
        %v1079 = vpack.c.b16 %v1015, %v1015
        %v1080 = vpack.c.b16 %v1016, %v1016
        %v1081 = vpack.c.b16 %v1017, %v1017
        %v1082 = vpack.c.b16 %v1018, %v1018
        %v1083 = vpack.c.b16 %v1019, %v1019
        %v1084 = vpack.c.b16 %v1020, %v1020
        %v1085 = vpack.c.b16 %v1021, %v1021
        %v1086 = vpack.c.b16 %v1022, %v1022
        %v1087 = vpack.c.b16 %v1023, %v1023
        %v1088 = vpack.c.b16 %v1024, %v1024
        %v1089 = vpack.c.b16 %v1025, %v1025
        %v1090 = vpack.c.b16 %v1026, %v1026
        %v1091 = vpack.c.b16 %v1027, %v1027
        %v1092 = vpack.c.b16 %v1028, %v1028
        %v1093 = vpack.c.b16 %v1029, %v1029
        %v1094 = vpack.c.b16 %v1030, %v1030
        %v1095 = vpack.c.b16 %v1031, %v1031
        %v1096 = vpack.c.b16 %v1032, %v1032
        %v1097 = vpack.c.b16 %v1033, %v1033
        %v1098 = vpack.c.b16 %v1034, %v1034
        %v1099 = vpack.c.b16 %v1035, %v1035
        %v1100 = vpack.c.b16 %v1036, %v1036
        %v1101 = vpack.c.b16 %v1037, %v1037
        %v1102 = vpack.c.b16 %v1038, %v1038
        %v1103 = vpack.c.b16 %v1039, %v1039
        %v1104 = vpack.c.b16 %v1040, %v1040
        %v1105 = vpack.c.b16 %v1041, %v1041
        %v1106 = vpack.c.b16 %v1042, %v1042
        %v1107 = vpack.c.b16 %v1043, %v1043
        %vm1172 = vcmask 519168
        %1173 = vst.msk [vmem:[%s210] sm:$0xf] %vm1172, %v1044
        %1174 = vst.msk [vmem:[%s210 + $0x4] sm:$0xf] %vm1172, %v1045
        %1175 = vst.msk [vmem:[%s210 + $0x8] sm:$0xf] %vm1172, %v1046
        %1176 = vst.msk [vmem:[%s210 + $0xc] sm:$0xf] %vm1172, %v1047
        %1177 = vst.msk [vmem:[%s210 + $0x10] sm:$0xf] %vm1172, %v1048
        %1178 = vst.msk [vmem:[%s210 + $0x14] sm:$0xf] %vm1172, %v1049
        %1179 = vst.msk [vmem:[%s210 + $0x18] sm:$0xf] %vm1172, %v1050
        %1180 = vst.msk [vmem:[%s210 + $0x1c] sm:$0xf] %vm1172, %v1051
        %1181 = vst.msk [vmem:[%s210 + $0x20] sm:$0xf] %vm1172, %v1052
        %1182 = vst.msk [vmem:[%s210 + $0x24] sm:$0xf] %vm1172, %v1053
        %1183 = vst.msk [vmem:[%s210 + $0x28] sm:$0xf] %vm1172, %v1054
        %1184 = vst.msk [vmem:[%s210 + $0x2c] sm:$0xf] %vm1172, %v1055
        %1185 = vst.msk [vmem:[%s210 + $0x30] sm:$0xf] %vm1172, %v1056
        %1186 = vst.msk [vmem:[%s210 + $0x34] sm:$0xf] %vm1172, %v1057
        %1187 = vst.msk [vmem:[%s210 + $0x38] sm:$0xf] %vm1172, %v1058
        %1188 = vst.msk [vmem:[%s210 + $0x3c] sm:$0xf] %vm1172, %v1059
        %1189 = vst.msk [vmem:[%s210 + $0x40] sm:$0xf] %vm1172, %v1060
        %1190 = vst.msk [vmem:[%s210 + $0x44] sm:$0xf] %vm1172, %v1061
        %1191 = vst.msk [vmem:[%s210 + $0x48] sm:$0xf] %vm1172, %v1062
        %1192 = vst.msk [vmem:[%s210 + $0x4c] sm:$0xf] %vm1172, %v1063
        %1193 = vst.msk [vmem:[%s210 + $0x50] sm:$0xf] %vm1172, %v1064
        %1194 = vst.msk [vmem:[%s210 + $0x54] sm:$0xf] %vm1172, %v1065
        %1195 = vst.msk [vmem:[%s210 + $0x58] sm:$0xf] %vm1172, %v1066
        %1196 = vst.msk [vmem:[%s210 + $0x5c] sm:$0xf] %vm1172, %v1067
        %1197 = vst.msk [vmem:[%s210 + $0x60] sm:$0xf] %vm1172, %v1068
        %1198 = vst.msk [vmem:[%s210 + $0x64] sm:$0xf] %vm1172, %v1069
        %1199 = vst.msk [vmem:[%s210 + $0x68] sm:$0xf] %vm1172, %v1070
        %1200 = vst.msk [vmem:[%s210 + $0x6c] sm:$0xf] %vm1172, %v1071
        %1201 = vst.msk [vmem:[%s210 + $0x70] sm:$0xf] %vm1172, %v1072
        %1202 = vst.msk [vmem:[%s210 + $0x74] sm:$0xf] %vm1172, %v1073
        %1203 = vst.msk [vmem:[%s210 + $0x78] sm:$0xf] %vm1172, %v1074
        %1204 = vst.msk [vmem:[%s210 + $0x7c] sm:$0xf] %vm1172, %v1075
        %1205 = vst.msk [vmem:[%s210 + $0x80] sm:$0xf] %vm1172, %v1076
        %1206 = vst.msk [vmem:[%s210 + $0x84] sm:$0xf] %vm1172, %v1077
        %1207 = vst.msk [vmem:[%s210 + $0x88] sm:$0xf] %vm1172, %v1078
        %1208 = vst.msk [vmem:[%s210 + $0x8c] sm:$0xf] %vm1172, %v1079
        %1209 = vst.msk [vmem:[%s210 + $0x90] sm:$0xf] %vm1172, %v1080
        %1210 = vst.msk [vmem:[%s210 + $0x94] sm:$0xf] %vm1172, %v1081
        %1211 = vst.msk [vmem:[%s210 + $0x98] sm:$0xf] %vm1172, %v1082
        %1212 = vst.msk [vmem:[%s210 + $0x9c] sm:$0xf] %vm1172, %v1083
        %1213 = vst.msk [vmem:[%s210 + $0xa0] sm:$0xf] %vm1172, %v1084
        %1214 = vst.msk [vmem:[%s210 + $0xa4] sm:$0xf] %vm1172, %v1085
        %1215 = vst.msk [vmem:[%s210 + $0xa8] sm:$0xf] %vm1172, %v1086
        %1216 = vst.msk [vmem:[%s210 + $0xac] sm:$0xf] %vm1172, %v1087
        %1217 = vst.msk [vmem:[%s210 + $0xb0] sm:$0xf] %vm1172, %v1088
        %1218 = vst.msk [vmem:[%s210 + $0xb4] sm:$0xf] %vm1172, %v1089
        %1219 = vst.msk [vmem:[%s210 + $0xb8] sm:$0xf] %vm1172, %v1090
        %1220 = vst.msk [vmem:[%s210 + $0xbc] sm:$0xf] %vm1172, %v1091
        %1221 = vst.msk [vmem:[%s210 + $0xc0] sm:$0xf] %vm1172, %v1092
        %1222 = vst.msk [vmem:[%s210 + $0xc4] sm:$0xf] %vm1172, %v1093
        %1223 = vst.msk [vmem:[%s210 + $0xc8] sm:$0xf] %vm1172, %v1094
        %1224 = vst.msk [vmem:[%s210 + $0xcc] sm:$0xf] %vm1172, %v1095
        %1225 = vst.msk [vmem:[%s210 + $0xd0] sm:$0xf] %vm1172, %v1096
        %1226 = vst.msk [vmem:[%s210 + $0xd4] sm:$0xf] %vm1172, %v1097
        %1227 = vst.msk [vmem:[%s210 + $0xd8] sm:$0xf] %vm1172, %v1098
        %1228 = vst.msk [vmem:[%s210 + $0xdc] sm:$0xf] %vm1172, %v1099
        %1229 = vst.msk [vmem:[%s210 + $0xe0] sm:$0xf] %vm1172, %v1100
        %1230 = vst.msk [vmem:[%s210 + $0xe4] sm:$0xf] %vm1172, %v1101
        %1231 = vst.msk [vmem:[%s210 + $0xe8] sm:$0xf] %vm1172, %v1102
        %1232 = vst.msk [vmem:[%s210 + $0xec] sm:$0xf] %vm1172, %v1103
        %1233 = vst.msk [vmem:[%s210 + $0xf0] sm:$0xf] %vm1172, %v1104
        %1234 = vst.msk [vmem:[%s210 + $0xf4] sm:$0xf] %vm1172, %v1105
        %1235 = vst.msk [vmem:[%s210 + $0xf8] sm:$0xf] %vm1172, %v1106
        %1236 = vst.msk [vmem:[%s210 + $0xfc] sm:$0xf] %vm1172, %v1107
        %v1237 = vand.u32 2147483647, %v852
        %v1238 = vand.u32 2147483647, %v853
        %v1239 = vand.u32 2147483647, %v854
        %v1240 = vand.u32 2147483647, %v855
        %v1241 = vand.u32 2147483647, %v856
        %v1242 = vand.u32 2147483647, %v857
        %v1243 = vand.u32 2147483647, %v858
        %v1244 = vand.u32 2147483647, %v859
        %v1245 = vand.u32 2147483647, %v860
        %v1246 = vand.u32 2147483647, %v861
        %v1247 = vand.u32 2147483647, %v862
        %v1248 = vand.u32 2147483647, %v863
        %v1249 = vand.u32 2147483647, %v864
        %v1250 = vand.u32 2147483647, %v865
        %v1251 = vand.u32 2147483647, %v866
        %v1252 = vand.u32 2147483647, %v867
        %v1253 = vand.u32 2147483647, %v868
        %v1254 = vand.u32 2147483647, %v869
        %v1255 = vand.u32 2147483647, %v870
        %v1256 = vand.u32 2147483647, %v871
        %v1257 = vand.u32 2147483647, %v872
        %v1258 = vand.u32 2147483647, %v873
        %v1259 = vand.u32 2147483647, %v874
        %v1260 = vand.u32 2147483647, %v875
        %v1261 = vand.u32 2147483647, %v876
        %v1262 = vand.u32 2147483647, %v877
        %v1263 = vand.u32 2147483647, %v878
        %v1264 = vand.u32 2147483647, %v879
        %v1265 = vand.u32 2147483647, %v880
        %v1266 = vand.u32 2147483647, %v881
        %v1267 = vand.u32 2147483647, %v882
        %v1268 = vand.u32 2147483647, %v883
        %v1269 = vand.u32 2147483647, %v884
        %v1270 = vand.u32 2147483647, %v885
        %v1271 = vand.u32 2147483647, %v886
        %v1272 = vand.u32 2147483647, %v887
        %v1273 = vand.u32 2147483647, %v888
        %v1274 = vand.u32 2147483647, %v889
        %v1275 = vand.u32 2147483647, %v890
        %v1276 = vand.u32 2147483647, %v891
        %v1277 = vand.u32 2147483647, %v892
        %v1278 = vand.u32 2147483647, %v893
        %v1279 = vand.u32 2147483647, %v894
        %v1280 = vand.u32 2147483647, %v895
        %v1281 = vand.u32 2147483647, %v896
        %v1282 = vand.u32 2147483647, %v897
        %v1283 = vand.u32 2147483647, %v898
        %v1284 = vand.u32 2147483647, %v899
        %v1285 = vand.u32 2147483647, %v900
        %v1286 = vand.u32 2147483647, %v901
        %v1287 = vand.u32 2147483647, %v902
        %v1288 = vand.u32 2147483647, %v903
        %v1289 = vand.u32 2147483647, %v904
        %v1290 = vand.u32 2147483647, %v905
        %v1291 = vand.u32 2147483647, %v906
        %v1292 = vand.u32 2147483647, %v907
        %v1293 = vand.u32 2147483647, %v908
        %v1294 = vand.u32 2147483647, %v909
        %v1295 = vand.u32 2147483647, %v910
        %v1296 = vand.u32 2147483647, %v911
        %v1297 = vand.u32 2147483647, %v912
        %v1298 = vand.u32 2147483647, %v913
        %v1299 = vand.u32 2147483647, %v914
        %v1300 = vand.u32 2147483647, %v915
        %vm1301 = vcmask 523264
        %v1302 = vsel %vm1301, %v1237, 0.0
        %v1303 = vsel %vm1301, %v1238, 0.0
        %v1304 = vadd.f32 %v1302, %v1303
        %v1305 = vsel %vm1301, %v1239, 0.0
        %v1306 = vadd.f32 %v1304, %v1305
        %v1307 = vsel %vm1301, %v1240, 0.0
        %v1308 = vadd.f32 %v1306, %v1307
        %v1309 = vsel %vm1301, %v1241, 0.0
        %v1310 = vadd.f32 %v1308, %v1309
        %v1311 = vsel %vm1301, %v1242, 0.0
        %v1312 = vadd.f32 %v1310, %v1311
        %v1313 = vsel %vm1301, %v1243, 0.0
        %v1314 = vadd.f32 %v1312, %v1313
        %v1315 = vsel %vm1301, %v1244, 0.0
        %v1316 = vadd.f32 %v1314, %v1315
        %v1317 = vsel %vm1301, %v1245, 0.0
        %v1318 = vadd.f32 %v1316, %v1317
        %v1319 = vsel %vm1301, %v1246, 0.0
        %v1320 = vadd.f32 %v1318, %v1319
        %v1321 = vsel %vm1301, %v1247, 0.0
        %v1322 = vadd.f32 %v1320, %v1321
        %v1323 = vsel %vm1301, %v1248, 0.0
        %v1324 = vadd.f32 %v1322, %v1323
        %v1325 = vsel %vm1301, %v1249, 0.0
        %v1326 = vadd.f32 %v1324, %v1325
        %v1327 = vsel %vm1301, %v1250, 0.0
        %v1328 = vadd.f32 %v1326, %v1327
        %v1329 = vsel %vm1301, %v1251, 0.0
        %v1330 = vadd.f32 %v1328, %v1329
        %v1331 = vsel %vm1301, %v1252, 0.0
        %v1332 = vadd.f32 %v1330, %v1331
        %v1333 = vsel %vm1301, %v1253, 0.0
        %v1334 = vadd.f32 %v1332, %v1333
        %v1335 = vsel %vm1301, %v1254, 0.0
        %v1336 = vadd.f32 %v1334, %v1335
        %v1337 = vsel %vm1301, %v1255, 0.0
        %v1338 = vadd.f32 %v1336, %v1337
        %v1339 = vsel %vm1301, %v1256, 0.0
        %v1340 = vadd.f32 %v1338, %v1339
        %v1341 = vsel %vm1301, %v1257, 0.0
        %v1342 = vadd.f32 %v1340, %v1341
        %v1343 = vsel %vm1301, %v1258, 0.0
        %v1344 = vadd.f32 %v1342, %v1343
        %v1345 = vsel %vm1301, %v1259, 0.0
        %v1346 = vadd.f32 %v1344, %v1345
        %v1347 = vsel %vm1301, %v1260, 0.0
        %v1348 = vadd.f32 %v1346, %v1347
        %v1349 = vsel %vm1301, %v1261, 0.0
        %v1350 = vadd.f32 %v1348, %v1349
        %v1351 = vsel %vm1301, %v1262, 0.0
        %v1352 = vadd.f32 %v1350, %v1351
        %v1353 = vsel %vm1301, %v1263, 0.0
        %v1354 = vadd.f32 %v1352, %v1353
        %v1355 = vsel %vm1301, %v1264, 0.0
        %v1356 = vadd.f32 %v1354, %v1355
        %v1357 = vsel %vm1301, %v1265, 0.0
        %v1358 = vadd.f32 %v1356, %v1357
        %v1359 = vsel %vm1301, %v1266, 0.0
        %v1360 = vadd.f32 %v1358, %v1359
        %v1361 = vsel %vm1301, %v1267, 0.0
        %v1362 = vadd.f32 %v1360, %v1361
        %v1363 = vsel %vm1301, %v1268, 0.0
        %v1364 = vadd.f32 %v1362, %v1363
        %v1365 = vsel %vm1301, %v1269, 0.0
        %v1366 = vadd.f32 %v1364, %v1365
        %v1367 = vsel %vm1301, %v1270, 0.0
        %v1368 = vadd.f32 %v1366, %v1367
        %v1369 = vsel %vm1301, %v1271, 0.0
        %v1370 = vadd.f32 %v1368, %v1369
        %v1371 = vsel %vm1301, %v1272, 0.0
        %v1372 = vadd.f32 %v1370, %v1371
        %v1373 = vsel %vm1301, %v1273, 0.0
        %v1374 = vadd.f32 %v1372, %v1373
        %v1375 = vsel %vm1301, %v1274, 0.0
        %v1376 = vadd.f32 %v1374, %v1375
        %v1377 = vsel %vm1301, %v1275, 0.0
        %v1378 = vadd.f32 %v1376, %v1377
        %v1379 = vsel %vm1301, %v1276, 0.0
        %v1380 = vadd.f32 %v1378, %v1379
        %v1381 = vsel %vm1301, %v1277, 0.0
        %v1382 = vadd.f32 %v1380, %v1381
        %v1383 = vsel %vm1301, %v1278, 0.0
        %v1384 = vadd.f32 %v1382, %v1383
        %v1385 = vsel %vm1301, %v1279, 0.0
        %v1386 = vadd.f32 %v1384, %v1385
        %v1387 = vsel %vm1301, %v1280, 0.0
        %v1388 = vadd.f32 %v1386, %v1387
        %v1389 = vsel %vm1301, %v1281, 0.0
        %v1390 = vadd.f32 %v1388, %v1389
        %v1391 = vsel %vm1301, %v1282, 0.0
        %v1392 = vadd.f32 %v1390, %v1391
        %v1393 = vsel %vm1301, %v1283, 0.0
        %v1394 = vadd.f32 %v1392, %v1393
        %v1395 = vsel %vm1301, %v1284, 0.0
        %v1396 = vadd.f32 %v1394, %v1395
        %v1397 = vsel %vm1301, %v1285, 0.0
        %v1398 = vadd.f32 %v1396, %v1397
        %v1399 = vsel %vm1301, %v1286, 0.0
        %v1400 = vadd.f32 %v1398, %v1399
        %v1401 = vsel %vm1301, %v1287, 0.0
        %v1402 = vadd.f32 %v1400, %v1401
        %v1403 = vsel %vm1301, %v1288, 0.0
        %v1404 = vadd.f32 %v1402, %v1403
        %v1405 = vsel %vm1301, %v1289, 0.0
        %v1406 = vadd.f32 %v1404, %v1405
        %v1407 = vsel %vm1301, %v1290, 0.0
        %v1408 = vadd.f32 %v1406, %v1407
        %v1409 = vsel %vm1301, %v1291, 0.0
        %v1410 = vadd.f32 %v1408, %v1409
        %v1411 = vsel %vm1301, %v1292, 0.0
        %v1412 = vadd.f32 %v1410, %v1411
        %v1413 = vsel %vm1301, %v1293, 0.0
        %v1414 = vadd.f32 %v1412, %v1413
        %v1415 = vsel %vm1301, %v1294, 0.0
        %v1416 = vadd.f32 %v1414, %v1415
        %v1417 = vsel %vm1301, %v1295, 0.0
        %v1418 = vadd.f32 %v1416, %v1417
        %v1419 = vsel %vm1301, %v1296, 0.0
        %v1420 = vadd.f32 %v1418, %v1419
        %v1421 = vsel %vm1301, %v1297, 0.0
        %v1422 = vadd.f32 %v1420, %v1421
        %v1423 = vsel %vm1301, %v1298, 0.0
        %v1424 = vadd.f32 %v1422, %v1423
        %v1425 = vsel %vm1301, %v1299, 0.0
        %v1426 = vadd.f32 %v1424, %v1425
        %v1427 = vsel %vm1301, %v1300, 0.0
        %v1428 = vadd.f32 %v1426, %v1427
        %1429 = vadd.xlane.f32.xlu0 %v1428
        %v1430 = vpop.xlane.xlu0 %1429
        %v1431 = vrot.slane %v1430, 4
        %v1432 = vadd.f32 %v1430, %v1431
        %v1433 = vrot.slane %v1432, 2
        %v1434 = vadd.f32 %v1432, %v1433
        %v1435 = vrot.slane %v1434, 1
        %v1436 = vadd.f32 %v1434, %v1435
        %s1437 = vtos %v1436
        %vm1438 = vcmp.gt.f32.partialorder %v852, 0.0
        %vm1439 = vcmp.gt.f32.partialorder %v853, 0.0
        %vm1440 = vcmp.gt.f32.partialorder %v854, 0.0
        %vm1441 = vcmp.gt.f32.partialorder %v855, 0.0
        %vm1442 = vcmp.gt.f32.partialorder %v856, 0.0
        %vm1443 = vcmp.gt.f32.partialorder %v857, 0.0
        %vm1444 = vcmp.gt.f32.partialorder %v858, 0.0
        %vm1445 = vcmp.gt.f32.partialorder %v859, 0.0
        %vm1446 = vcmp.gt.f32.partialorder %v860, 0.0
        %vm1447 = vcmp.gt.f32.partialorder %v861, 0.0
        %vm1448 = vcmp.gt.f32.partialorder %v862, 0.0
        %vm1449 = vcmp.gt.f32.partialorder %v863, 0.0
        %vm1450 = vcmp.gt.f32.partialorder %v864, 0.0
        %vm1451 = vcmp.gt.f32.partialorder %v865, 0.0
        %vm1452 = vcmp.gt.f32.partialorder %v866, 0.0
        %vm1453 = vcmp.gt.f32.partialorder %v867, 0.0
        %vm1454 = vcmp.gt.f32.partialorder %v868, 0.0
        %vm1455 = vcmp.gt.f32.partialorder %v869, 0.0
        %vm1456 = vcmp.gt.f32.partialorder %v870, 0.0
        %vm1457 = vcmp.gt.f32.partialorder %v871, 0.0
        %vm1458 = vcmp.gt.f32.partialorder %v872, 0.0
        %vm1459 = vcmp.gt.f32.partialorder %v873, 0.0
        %vm1460 = vcmp.gt.f32.partialorder %v874, 0.0
        %vm1461 = vcmp.gt.f32.partialorder %v875, 0.0
        %vm1462 = vcmp.gt.f32.partialorder %v876, 0.0
        %vm1463 = vcmp.gt.f32.partialorder %v877, 0.0
        %vm1464 = vcmp.gt.f32.partialorder %v878, 0.0
        %vm1465 = vcmp.gt.f32.partialorder %v879, 0.0
        %vm1466 = vcmp.gt.f32.partialorder %v880, 0.0
        %vm1467 = vcmp.gt.f32.partialorder %v881, 0.0
        %vm1468 = vcmp.gt.f32.partialorder %v882, 0.0
        %vm1469 = vcmp.gt.f32.partialorder %v883, 0.0
        %vm1470 = vcmp.gt.f32.partialorder %v884, 0.0
        %vm1471 = vcmp.gt.f32.partialorder %v885, 0.0
        %vm1472 = vcmp.gt.f32.partialorder %v886, 0.0
        %vm1473 = vcmp.gt.f32.partialorder %v887, 0.0
        %vm1474 = vcmp.gt.f32.partialorder %v888, 0.0
        %vm1475 = vcmp.gt.f32.partialorder %v889, 0.0
        %vm1476 = vcmp.gt.f32.partialorder %v890, 0.0
        %vm1477 = vcmp.gt.f32.partialorder %v891, 0.0
        %vm1478 = vcmp.gt.f32.partialorder %v892, 0.0
        %vm1479 = vcmp.gt.f32.partialorder %v893, 0.0
        %vm1480 = vcmp.gt.f32.partialorder %v894, 0.0
        %vm1481 = vcmp.gt.f32.partialorder %v895, 0.0
        %vm1482 = vcmp.gt.f32.partialorder %v896, 0.0
        %vm1483 = vcmp.gt.f32.partialorder %v897, 0.0
        %vm1484 = vcmp.gt.f32.partialorder %v898, 0.0
        %vm1485 = vcmp.gt.f32.partialorder %v899, 0.0
        %vm1486 = vcmp.gt.f32.partialorder %v900, 0.0
        %vm1487 = vcmp.gt.f32.partialorder %v901, 0.0
        %vm1488 = vcmp.gt.f32.partialorder %v902, 0.0
        %vm1489 = vcmp.gt.f32.partialorder %v903, 0.0
        %vm1490 = vcmp.gt.f32.partialorder %v904, 0.0
        %vm1491 = vcmp.gt.f32.partialorder %v905, 0.0
        %vm1492 = vcmp.gt.f32.partialorder %v906, 0.0
        %vm1493 = vcmp.gt.f32.partialorder %v907, 0.0
        %vm1494 = vcmp.gt.f32.partialorder %v908, 0.0
        %vm1495 = vcmp.gt.f32.partialorder %v909, 0.0
        %vm1496 = vcmp.gt.f32.partialorder %v910, 0.0
        %vm1497 = vcmp.gt.f32.partialorder %v911, 0.0
        %vm1498 = vcmp.gt.f32.partialorder %v912, 0.0
        %vm1499 = vcmp.gt.f32.partialorder %v913, 0.0
        %vm1500 = vcmp.gt.f32.partialorder %v914, 0.0
        %vm1501 = vcmp.gt.f32.partialorder %v915, 0.0
        %v1502 = vsel %vm1438, 1, 0
        %v1503 = vsel %vm1439, 1, 0
        %v1504 = vsel %vm1440, 1, 0
        %v1505 = vsel %vm1441, 1, 0
        %v1506 = vsel %vm1442, 1, 0
        %v1507 = vsel %vm1443, 1, 0
        %v1508 = vsel %vm1444, 1, 0
        %v1509 = vsel %vm1445, 1, 0
        %v1510 = vsel %vm1446, 1, 0
        %v1511 = vsel %vm1447, 1, 0
        %v1512 = vsel %vm1448, 1, 0
        %v1513 = vsel %vm1449, 1, 0
        %v1514 = vsel %vm1450, 1, 0
        %v1515 = vsel %vm1451, 1, 0
        %v1516 = vsel %vm1452, 1, 0
        %v1517 = vsel %vm1453, 1, 0
        %v1518 = vsel %vm1454, 1, 0
        %v1519 = vsel %vm1455, 1, 0
        %v1520 = vsel %vm1456, 1, 0
        %v1521 = vsel %vm1457, 1, 0
        %v1522 = vsel %vm1458, 1, 0
        %v1523 = vsel %vm1459, 1, 0
        %v1524 = vsel %vm1460, 1, 0
        %v1525 = vsel %vm1461, 1, 0
        %v1526 = vsel %vm1462, 1, 0
        %v1527 = vsel %vm1463, 1, 0
        %v1528 = vsel %vm1464, 1, 0
        %v1529 = vsel %vm1465, 1, 0
        %v1530 = vsel %vm1466, 1, 0
        %v1531 = vsel %vm1467, 1, 0
        %v1532 = vsel %vm1468, 1, 0
        %v1533 = vsel %vm1469, 1, 0
        %v1534 = vsel %vm1470, 1, 0
        %v1535 = vsel %vm1471, 1, 0
        %v1536 = vsel %vm1472, 1, 0
        %v1537 = vsel %vm1473, 1, 0
        %v1538 = vsel %vm1474, 1, 0
        %v1539 = vsel %vm1475, 1, 0
        %v1540 = vsel %vm1476, 1, 0
        %v1541 = vsel %vm1477, 1, 0
        %v1542 = vsel %vm1478, 1, 0
        %v1543 = vsel %vm1479, 1, 0
        %v1544 = vsel %vm1480, 1, 0
        %v1545 = vsel %vm1481, 1, 0
        %v1546 = vsel %vm1482, 1, 0
        %v1547 = vsel %vm1483, 1, 0
        %v1548 = vsel %vm1484, 1, 0
        %v1549 = vsel %vm1485, 1, 0
        %v1550 = vsel %vm1486, 1, 0
        %v1551 = vsel %vm1487, 1, 0
        %v1552 = vsel %vm1488, 1, 0
        %v1553 = vsel %vm1489, 1, 0
        %v1554 = vsel %vm1490, 1, 0
        %v1555 = vsel %vm1491, 1, 0
        %v1556 = vsel %vm1492, 1, 0
        %v1557 = vsel %vm1493, 1, 0
        %v1558 = vsel %vm1494, 1, 0
        %v1559 = vsel %vm1495, 1, 0
        %v1560 = vsel %vm1496, 1, 0
        %v1561 = vsel %vm1497, 1, 0
        %v1562 = vsel %vm1498, 1, 0
        %v1563 = vsel %vm1499, 1, 0
        %v1564 = vsel %vm1500, 1, 0
        %v1565 = vsel %vm1501, 1, 0
        %v1566 = vcvt.s32.f32 %v1502
        %v1567 = vcvt.s32.f32 %v1503
        %v1568 = vcvt.s32.f32 %v1504
        %v1569 = vcvt.s32.f32 %v1505
        %v1570 = vcvt.s32.f32 %v1506
        %v1571 = vcvt.s32.f32 %v1507
        %v1572 = vcvt.s32.f32 %v1508
        %v1573 = vcvt.s32.f32 %v1509
        %v1574 = vcvt.s32.f32 %v1510
        %v1575 = vcvt.s32.f32 %v1511
        %v1576 = vcvt.s32.f32 %v1512
        %v1577 = vcvt.s32.f32 %v1513
        %v1578 = vcvt.s32.f32 %v1514
        %v1579 = vcvt.s32.f32 %v1515
        %v1580 = vcvt.s32.f32 %v1516
        %v1581 = vcvt.s32.f32 %v1517
        %v1582 = vcvt.s32.f32 %v1518
        %v1583 = vcvt.s32.f32 %v1519
        %v1584 = vcvt.s32.f32 %v1520
        %v1585 = vcvt.s32.f32 %v1521
        %v1586 = vcvt.s32.f32 %v1522
        %v1587 = vcvt.s32.f32 %v1523
        %v1588 = vcvt.s32.f32 %v1524
        %v1589 = vcvt.s32.f32 %v1525
        %v1590 = vcvt.s32.f32 %v1526
        %v1591 = vcvt.s32.f32 %v1527
        %v1592 = vcvt.s32.f32 %v1528
        %v1593 = vcvt.s32.f32 %v1529
        %v1594 = vcvt.s32.f32 %v1530
        %v1595 = vcvt.s32.f32 %v1531
        %v1596 = vcvt.s32.f32 %v1532
        %v1597 = vcvt.s32.f32 %v1533
        %v1598 = vcvt.s32.f32 %v1534
        %v1599 = vcvt.s32.f32 %v1535
        %v1600 = vcvt.s32.f32 %v1536
        %v1601 = vcvt.s32.f32 %v1537
        %v1602 = vcvt.s32.f32 %v1538
        %v1603 = vcvt.s32.f32 %v1539
        %v1604 = vcvt.s32.f32 %v1540
        %v1605 = vcvt.s32.f32 %v1541
        %v1606 = vcvt.s32.f32 %v1542
        %v1607 = vcvt.s32.f32 %v1543
        %v1608 = vcvt.s32.f32 %v1544
        %v1609 = vcvt.s32.f32 %v1545
        %v1610 = vcvt.s32.f32 %v1546
        %v1611 = vcvt.s32.f32 %v1547
        %v1612 = vcvt.s32.f32 %v1548
        %v1613 = vcvt.s32.f32 %v1549
        %v1614 = vcvt.s32.f32 %v1550
        %v1615 = vcvt.s32.f32 %v1551
        %v1616 = vcvt.s32.f32 %v1552
        %v1617 = vcvt.s32.f32 %v1553
        %v1618 = vcvt.s32.f32 %v1554
        %v1619 = vcvt.s32.f32 %v1555
        %v1620 = vcvt.s32.f32 %v1556
        %v1621 = vcvt.s32.f32 %v1557
        %v1622 = vcvt.s32.f32 %v1558
        %v1623 = vcvt.s32.f32 %v1559
        %v1624 = vcvt.s32.f32 %v1560
        %v1625 = vcvt.s32.f32 %v1561
        %v1626 = vcvt.s32.f32 %v1562
        %v1627 = vcvt.s32.f32 %v1563
        %v1628 = vcvt.s32.f32 %v1564
        %v1629 = vcvt.s32.f32 %v1565
        %v1630 = vsel %vm1301, %v1566, 0.0
        %v1631 = vsel %vm1301, %v1567, 0.0
        %v1632 = vadd.f32 %v1630, %v1631
        %v1633 = vsel %vm1301, %v1568, 0.0
        %v1634 = vadd.f32 %v1632, %v1633
        %v1635 = vsel %vm1301, %v1569, 0.0
        %v1636 = vadd.f32 %v1634, %v1635
        %v1637 = vsel %vm1301, %v1570, 0.0
        %v1638 = vadd.f32 %v1636, %v1637
        %v1639 = vsel %vm1301, %v1571, 0.0
        %v1640 = vadd.f32 %v1638, %v1639
        %v1641 = vsel %vm1301, %v1572, 0.0
        %v1642 = vadd.f32 %v1640, %v1641
        %v1643 = vsel %vm1301, %v1573, 0.0
        %v1644 = vadd.f32 %v1642, %v1643
        %v1645 = vsel %vm1301, %v1574, 0.0
        %v1646 = vadd.f32 %v1644, %v1645
        %v1647 = vsel %vm1301, %v1575, 0.0
        %v1648 = vadd.f32 %v1646, %v1647
        %v1649 = vsel %vm1301, %v1576, 0.0
        %v1650 = vadd.f32 %v1648, %v1649
        %v1651 = vsel %vm1301, %v1577, 0.0
        %v1652 = vadd.f32 %v1650, %v1651
        %v1653 = vsel %vm1301, %v1578, 0.0
        %v1654 = vadd.f32 %v1652, %v1653
        %v1655 = vsel %vm1301, %v1579, 0.0
        %v1656 = vadd.f32 %v1654, %v1655
        %v1657 = vsel %vm1301, %v1580, 0.0
        %v1658 = vadd.f32 %v1656, %v1657
        %v1659 = vsel %vm1301, %v1581, 0.0
        %v1660 = vadd.f32 %v1658, %v1659
        %v1661 = vsel %vm1301, %v1582, 0.0
        %v1662 = vadd.f32 %v1660, %v1661
        %v1663 = vsel %vm1301, %v1583, 0.0
        %v1664 = vadd.f32 %v1662, %v1663
        %v1665 = vsel %vm1301, %v1584, 0.0
        %v1666 = vadd.f32 %v1664, %v1665
        %v1667 = vsel %vm1301, %v1585, 0.0
        %v1668 = vadd.f32 %v1666, %v1667
        %v1669 = vsel %vm1301, %v1586, 0.0
        %v1670 = vadd.f32 %v1668, %v1669
        %v1671 = vsel %vm1301, %v1587, 0.0
        %v1672 = vadd.f32 %v1670, %v1671
        %v1673 = vsel %vm1301, %v1588, 0.0
        %v1674 = vadd.f32 %v1672, %v1673
        %v1675 = vsel %vm1301, %v1589, 0.0
        %v1676 = vadd.f32 %v1674, %v1675
        %v1677 = vsel %vm1301, %v1590, 0.0
        %v1678 = vadd.f32 %v1676, %v1677
        %v1679 = vsel %vm1301, %v1591, 0.0
        %v1680 = vadd.f32 %v1678, %v1679
        %v1681 = vsel %vm1301, %v1592, 0.0
        %v1682 = vadd.f32 %v1680, %v1681
        %v1683 = vsel %vm1301, %v1593, 0.0
        %v1684 = vadd.f32 %v1682, %v1683
        %v1685 = vsel %vm1301, %v1594, 0.0
        %v1686 = vadd.f32 %v1684, %v1685
        %v1687 = vsel %vm1301, %v1595, 0.0
        %v1688 = vadd.f32 %v1686, %v1687
        %v1689 = vsel %vm1301, %v1596, 0.0
        %v1690 = vadd.f32 %v1688, %v1689
        %v1691 = vsel %vm1301, %v1597, 0.0
        %v1692 = vadd.f32 %v1690, %v1691
        %v1693 = vsel %vm1301, %v1598, 0.0
        %v1694 = vadd.f32 %v1692, %v1693
        %v1695 = vsel %vm1301, %v1599, 0.0
        %v1696 = vadd.f32 %v1694, %v1695
        %v1697 = vsel %vm1301, %v1600, 0.0
        %v1698 = vadd.f32 %v1696, %v1697
        %v1699 = vsel %vm1301, %v1601, 0.0
        %v1700 = vadd.f32 %v1698, %v1699
        %v1701 = vsel %vm1301, %v1602, 0.0
        %v1702 = vadd.f32 %v1700, %v1701
        %v1703 = vsel %vm1301, %v1603, 0.0
        %v1704 = vadd.f32 %v1702, %v1703
        %v1705 = vsel %vm1301, %v1604, 0.0
        %v1706 = vadd.f32 %v1704, %v1705
        %v1707 = vsel %vm1301, %v1605, 0.0
        %v1708 = vadd.f32 %v1706, %v1707
        %v1709 = vsel %vm1301, %v1606, 0.0
        %v1710 = vadd.f32 %v1708, %v1709
        %v1711 = vsel %vm1301, %v1607, 0.0
        %v1712 = vadd.f32 %v1710, %v1711
        %v1713 = vsel %vm1301, %v1608, 0.0
        %v1714 = vadd.f32 %v1712, %v1713
        %v1715 = vsel %vm1301, %v1609, 0.0
        %v1716 = vadd.f32 %v1714, %v1715
        %v1717 = vsel %vm1301, %v1610, 0.0
        %v1718 = vadd.f32 %v1716, %v1717
        %v1719 = vsel %vm1301, %v1611, 0.0
        %v1720 = vadd.f32 %v1718, %v1719
        %v1721 = vsel %vm1301, %v1612, 0.0
        %v1722 = vadd.f32 %v1720, %v1721
        %v1723 = vsel %vm1301, %v1613, 0.0
        %v1724 = vadd.f32 %v1722, %v1723
        %v1725 = vsel %vm1301, %v1614, 0.0
        %v1726 = vadd.f32 %v1724, %v1725
        %v1727 = vsel %vm1301, %v1615, 0.0
        %v1728 = vadd.f32 %v1726, %v1727
        %v1729 = vsel %vm1301, %v1616, 0.0
        %v1730 = vadd.f32 %v1728, %v1729
        %v1731 = vsel %vm1301, %v1617, 0.0
        %v1732 = vadd.f32 %v1730, %v1731
        %v1733 = vsel %vm1301, %v1618, 0.0
        %v1734 = vadd.f32 %v1732, %v1733
        %v1735 = vsel %vm1301, %v1619, 0.0
        %v1736 = vadd.f32 %v1734, %v1735
        %v1737 = vsel %vm1301, %v1620, 0.0
        %v1738 = vadd.f32 %v1736, %v1737
        %v1739 = vsel %vm1301, %v1621, 0.0
        %v1740 = vadd.f32 %v1738, %v1739
        %v1741 = vsel %vm1301, %v1622, 0.0
        %v1742 = vadd.f32 %v1740, %v1741
        %v1743 = vsel %vm1301, %v1623, 0.0
        %v1744 = vadd.f32 %v1742, %v1743
        %v1745 = vsel %vm1301, %v1624, 0.0
        %v1746 = vadd.f32 %v1744, %v1745
        %v1747 = vsel %vm1301, %v1625, 0.0
        %v1748 = vadd.f32 %v1746, %v1747
        %v1749 = vsel %vm1301, %v1626, 0.0
        %v1750 = vadd.f32 %v1748, %v1749
        %v1751 = vsel %vm1301, %v1627, 0.0
        %v1752 = vadd.f32 %v1750, %v1751
        %v1753 = vsel %vm1301, %v1628, 0.0
        %v1754 = vadd.f32 %v1752, %v1753
        %v1755 = vsel %vm1301, %v1629, 0.0
        %v1756 = vadd.f32 %v1754, %v1755
        %1757 = vadd.xlane.f32.xlu0 %v1756
        %v1758 = vpop.xlane.xlu0 %1757
        %v1759 = vrot.slane %v1758, 4
        %v1760 = vadd.f32 %v1758, %v1759
        %v1761 = vrot.slane %v1760, 2
        %v1762 = vadd.f32 %v1760, %v1761
        %v1763 = vrot.slane %v1762, 1
        %v1764 = vadd.f32 %v1762, %v1763
        %s1765 = vtos %v1764
        %v1766 = vlaneseq
        %v1767 = vshrl.u32 %v1766, 7
        %vm1768 = vcmp.eq.s32.totalorder %v1767, 0
        %v1769 = vstv %s1437
        %v1770 = vsel %vm1768, %v1769, 0.0
        %vm1771 = vcmp.eq.s32.totalorder %v1767, 1
        %v1772 = vstv %s1765
        %v1773 = vsel %vm1771, %v1772, %v1770
        %1774 = vst [vmem:[%s199] sm:$0xff] %v1773
        %s1775 = smul.u32 64, %s19
        %p1776 = scmp.lt.s32.totalorder %s1775, 255
        %s1777 = scalar_select %p1776, %s1775, 255
        %s1778 = smul.addr %s1777, 4
        %s1779 = scalar_lea.vmem %s3, %s1778
        %s1780 = sand.u32 %s121, 1
        %s1781 = scalar_lea.sflag [#allocation3], %s1780
        %s1782 = sand.u32 %s121, 1
        %s1783 = smul.addr %s1782, 8
        %s1784 = scalar_lea.vmem [#allocation2], %s1783
        // Predicated region
        $region33: #{tpu_custom_call.1} parent=31 // pred_check
          %p1785 = pneg %p105
        $region34: #{tpu_custom_call.1} parent=31 // pred_check_branch
          %1787 = sbr.rel (%p1785) target = $region36
        $region35: #{tpu_custom_call.1} parent=31 // pred_region
          %s1788 = smul.u32 64, %s19
        $region36: #{tpu_custom_call.1} parent=31 // pred_fallthru
          _
        // Predicated region
        $region37: #{tpu_custom_call.1} parent=31 // pred_check
          %p1789 = pneg %p131
        $region38: #{tpu_custom_call.1} parent=31 // pred_check_branch
          %1791 = sbr.rel (%p1789) target = $region40
        $region39: #{tpu_custom_call.1} parent=31 // pred_region
          %s1793 = ssub.s32 128, 128
          %1794 = vsyncadd %s1781, %s1793
          %s1795 = smul.addr %s19, 128
          %s1796 = scalar_lea.hbm %s4, %s1795
          %s1798 = sshll.u32 %s1784, 4
          %s1799 = int_to_ptr.vmem [resolvable:$true] %s1798
          %1801 = dma.vmem_to_hbm [thread:$0]  %s1799, 128, %s1796, %s1781
        $region40: #{tpu_custom_call.1} parent=31 // pred_fallthru
          _
      $region32: #{tpu_custom_call.1} parent=5 // pred_fallthru
        _
      %p1802 = scmp.le.s32.totalorder 2, %s14
      // Predicated region
      $region41: #{tpu_custom_call.1} parent=5 // pred_check
        %p1803 = pneg %p1802
      $region42: #{tpu_custom_call.1} parent=5 // pred_check_branch
        %1805 = sbr.rel (%p1803) target = $region44
      $region43: #{tpu_custom_call.1} parent=5 // pred_region
        %s1806 = ssub.s32 %s14, 2
        // Predicated region
        $region45: #{tpu_custom_call.1} parent=43 // pred_check
          %p1807 = pneg %p111
        $region46: #{tpu_custom_call.1} parent=43 // pred_check_branch
          %1809 = sbr.rel (%p1807) target = $region48
        $region47: #{tpu_custom_call.1} parent=43 // pred_region
          %s1810 = smul.u32 64, %s20
          %p1811 = scmp.lt.s32.totalorder %s1810, 255
          %s1812 = scalar_select %p1811, %s1810, 255
          %s1813 = smul.addr %s1812, 4
          %s1814 = scalar_lea.vmem %s3, %s1813
        $region48: #{tpu_custom_call.1} parent=43 // pred_fallthru
          _
        // Predicated region
        $region49: #{tpu_custom_call.1} parent=43 // pred_check
          %p1815 = pneg %p137
        $region50: #{tpu_custom_call.1} parent=43 // pred_check_branch
          %1817 = sbr.rel (%p1815) target = $region52
        $region51: #{tpu_custom_call.1} parent=43 // pred_region
          %s1818 = sand.u32 %s122, 1
          %s1819 = scalar_lea.sflag [#allocation3], %s1818
          %s1820 = sand.u32 %s122, 1
          %s1821 = smul.addr %s1820, 8
          %s1822 = scalar_lea.vmem [#allocation2], %s1821
          %1823 = dma.done %s1819, 128
        $region52: #{tpu_custom_call.1} parent=43 // pred_fallthru
          _
      $region44: #{tpu_custom_call.1} parent=5 // pred_fallthru
        _
    $region6: #{tpu_custom_call.1} parent=1 // loop_footer
      %s18 = sadd.s32 1, %s14
    $region7: #{tpu_custom_call.1} parent=1 // loop_footer_branch
      %13 = sbr.rel target = $region3
    $region8: #{tpu_custom_call.1} parent=1 // loop_exit
      _
    %1824 = vsyncpa [#allocation3], 1
    %s1825 = scalar_lea.sflag [#allocation3], 1
    %1826 = vsyncpa %s1825, 1

</llo_original>
